<compile_context>
chip_gen: v6e
topology: v6e:2x2x1
jax: 0.10.0
libtpu: 0.0.40
codegen_flags: <defaults>
</compile_context>

<pallas_src>
import jax
import jax.numpy as jnp
from jax import lax
from jax.experimental import pallas as pl
from jax.experimental.pallas import tpu as pltpu

HIDDEN = 64
BN_EPS = 1e-5
RRELU_SLOPE = (1.0 / 8.0 + 1.0 / 3.0) / 2.0  # eval-mode RReLU negative slope

GI0_VMEM_BUDGET = 12 * 1024 * 1024  # bytes for gi0 scratch + streamed x blocks


def _round_up(x, m):
    return ((x + m - 1) // m) * m


# ---------------------------------------------------------------------------
# Kernel factory (static sizes baked in)
# ---------------------------------------------------------------------------
def _make_kernel(H, A, C, Bt, T, n_chunks):
    H2, H4, H6, H8 = 2 * H, 4 * H, 6 * H, 8 * H
    rem = T - (n_chunks - 1) * C  # steps in the last chunk (1..C)

    def kernel(x_ref,          # (C, Bt, A)   streamed, time-major
               w_gi0_ref,      # (A, 8H)      layer-0 input weights (8H layout)
               b8_ref,         # (1, 8H)      all constant gate biases
               w_big_ref,      # (2H, 8H)     fused recurrent weights
               bn_scale_ref,   # (1, H)
               bn_shift_ref,   # (1, H)
               lin_w_ref,      # (H, 1)
               lin_b_ref,      # (1, 1)
               out_ref,        # (Bt, 1)
               state_ref,      # (Bt, 2H) scratch: [h0(t-1) | h1(t-2)]
               gi0_ref):       # (C*Bt, 8H) scratch: hoisted input projection
        c = pl.program_id(1)

        # --- Phase 1: whole-chunk input projection, one big matmul. ---------
        x2d = x_ref[...].reshape(C * Bt, A)
        gi0_ref[...] = (
            jnp.dot(x2d, w_gi0_ref[...], preferred_element_type=jnp.float32)
            + b8_ref[...])

        # --- Gate math: everything 128-lane aligned, both layers at once. ---
        def gates(pre, hcat):
            rz = jax.nn.sigmoid(pre[:, 0:H4])       # [r0|r1|z0|z1]
            r = rz[:, 0:H2]                         # [r0|r1]
            z = rz[:, H2:H4]                        # [z0|z1]
            n = jnp.tanh(pre[:, H6:H8] + r * pre[:, H4:H6])   # [n0|n1]
            return (1.0 - z) * n + z * hcat         # [h0(t)|h1(t-1)]

        def step_math(hcat, gi0_t):
            fused = jnp.dot(hcat, w_big_ref[...],
                            preferred_element_type=jnp.float32)
            return gates(gi0_t + fused, hcat)

        def gi0_at(i):
            off = i * Bt
            if not isinstance(off, int):
                off = pl.multiple_of(off, 8)        # Bt is a multiple of 8
            return gi0_ref[pl.ds(off, Bt), :]

        def run_chunk(n_steps, first):
            if first:
                # Peeled global step 0: h0(-1)=h1(-1)=0 -> fused term is zero.
                h = gates(gi0_at(0), jnp.zeros((Bt, H2), jnp.float32))
                h = jnp.concatenate(
                    [h[:, 0:H], jnp.zeros((Bt, H), jnp.float32)], axis=-1)
                lo = 1
            else:
                h = state_ref[...]
                lo = 0

            def body(i, hcat):
                return step_math(hcat, gi0_at(i))

            trips = n_steps - lo
            if trips > 0:
                h = lax.fori_loop(lo, n_steps, body, h, unroll=min(8, trips))
            state_ref[...] = h

        def finish():
            hcat = state_ref[...]                   # [h0(T-1) | h1(T-2)]
            pre = (jnp.dot(hcat, w_big_ref[...],
                           preferred_element_type=jnp.float32)
                   + jnp.broadcast_to(b8_ref[...], (Bt, H8)))
            h1 = gates(pre, hcat)[:, H:H2]          # h1(T-1)

            # BatchNorm1d (eval, pre-folded) -> RReLU (eval) -> Linear -> Sigmoid
            y = h1 * bn_scale_ref[...] + bn_shift_ref[...]
            y = jnp.where(y >= 0.0, y, RRELU_SLOPE * y)
            logits = (jnp.dot(y, lin_w_ref[...],
                              preferred_element_type=jnp.float32)
                      + lin_b_ref[...])
            out_ref[...] = jax.nn.sigmoid(logits)

        # --- Phase 2/3: chunk dispatch (all branching is static or pl.when) -
        if n_chunks == 1:
            run_chunk(T, first=True)
            finish()
        else:
            @pl.when(c == 0)
            def _first():
                run_chunk(C, first=True)

            if rem == C:
                @pl.when(c > 0)
                def _rest():
                    run_chunk(C, first=False)
            else:
                if n_chunks > 2:
                    @pl.when(jnp.logical_and(c > 0, c < n_chunks - 1))
                    def _mid():
                        run_chunk(C, first=False)

                @pl.when(c == n_chunks - 1)
                def _last():
                    run_chunk(rem, first=False)

            @pl.when(c == n_chunks - 1)
            def _fin():
                finish()

    return kernel


# ---------------------------------------------------------------------------
# Wrapper
# ---------------------------------------------------------------------------
def _pick_tiles(B, T, A, H):
    Bt = min(_round_up(max(B, 1), 8), 128)
    B_pad = _round_up(B, Bt)
    # gi0 scratch row + double-buffered x rows, per time step, in bytes.
    per_step = Bt * 4 * (8 * H + 2 * A)
    C = max(1, min(T, 512, GI0_VMEM_BUDGET // per_step))
    n_chunks = pl.cdiv(T, C)
    T_pad = n_chunks * C
    return Bt, B_pad, C, n_chunks, T_pad


@jax.jit
def sentiment_rnn_forward(x, params):
    """x: (B, T, A) float32 -> (B,) float32 probabilities."""
    B, T, A = x.shape
    H = HIDDEN
    f32 = jnp.float32
    Bt, B_pad, C, n_chunks, T_pad = _pick_tiles(B, T, A, H)
    n_btiles = B_pad // Bt

    # ---- Fold / fuse parameters once, outside the kernel. ------------------
    w_ih0, w_hh0 = params["w_ih0"], params["w_hh0"]
    b_ih0, b_hh0 = params["b_ih0"], params["b_hh0"]
    w_ih1, w_hh1 = params["w_ih1"], params["w_hh1"]
    b_ih1, b_hh1 = params["b_ih1"], params["b_hh1"]

    # Column blocks: [ r0 | r1 | z0 | z1 | ghn0 | ghn1 | gin0 | gin1 ]
    zA = jnp.zeros((A, H), f32)
    w_gi08 = jnp.concatenate(
        [w_ih0[:, 0:H], zA, w_ih0[:, H:2 * H], zA,
         zA, zA, w_ih0[:, 2 * H:3 * H], zA], axis=1)          # (A, 8H)

    b8 = jnp.concatenate(
        [b_ih0[:, 0:H] + b_hh0[:, 0:H],          # r0
         b_ih1[:, 0:H] + b_hh1[:, 0:H],          # r1
         b_ih0[:, H:2 * H] + b_hh0[:, H:2 * H],  # z0
         b_ih1[:, H:2 * H] + b_hh1[:, H:2 * H],  # z1
         b_hh0[:, 2 * H:3 * H],                  # ghn0 (b_hn0)
         b_hh1[:, 2 * H:3 * H],                  # ghn1 (b_hn1)
         b_ih0[:, 2 * H:3 * H],                  # gin0 (b_in0)
         b_ih1[:, 2 * H:3 * H]], axis=1)         # gin1 (b_in1)   (1, 8H)

    zH = jnp.zeros((H, H), f32)
    w_big_top = jnp.concatenate(                 # rows 0:H  <- h0(t-1)
        [w_hh0[:, 0:H], w_ih1[:, 0:H], w_hh0[:, H:2 * H], w_ih1[:, H:2 * H],
         w_hh0[:, 2 * H:3 * H], zH, zH, w_ih1[:, 2 * H:3 * H]], axis=1)
    w_big_bot = jnp.concatenate(                 # rows H:2H <- h1(t-2)
        [zH, w_hh1[:, 0:H], zH, w_hh1[:, H:2 * H],
         zH, w_hh1[:, 2 * H:3 * H], zH, zH], axis=1)
    w_big = jnp.concatenate([w_big_top, w_big_bot], axis=0)   # (2H, 8H)

    bn_scale = params["bn_gamma"] * lax.rsqrt(params["bn_var"] + BN_EPS)
    bn_shift = params["bn_beta"] - params["bn_mean"] * bn_scale

    # Time-major, padded input (padded batch rows / time steps are never used).
    x_tm = jnp.transpose(x, (1, 0, 2)).astype(f32)
    x_tm = jnp.pad(x_tm, ((0, T_pad - T), (0, B_pad - B), (0, 0)))

    kernel = _make_kernel(H, A, C, Bt, T, n_chunks)

    def full(shape):
        zeros = (0,) * len(shape)
        return pl.BlockSpec(shape, lambda bt, c, _z=zeros: _z)

    in_specs = [
        pl.BlockSpec((C, Bt, A), lambda bt, c: (c, bt, 0)),   # x: streamed
        full((A, 8 * H)),      # w_gi08
        full((1, 8 * H)),      # b8
        full((2 * H, 8 * H)),  # w_big
        full((1, H)),          # bn_scale
        full((1, H)),          # bn_shift
        full((H, 1)),          # lin_w
        full((1, 1)),          # lin_b
    ]
    out_spec = pl.BlockSpec((Bt, 1), lambda bt, c: (bt, 0))

    out = pl.pallas_call(
        kernel,
        out_shape=jax.ShapeDtypeStruct((B_pad, 1), f32),
        grid_spec=pltpu.PrefetchScalarGridSpec(
            num_scalar_prefetch=0,
            grid=(n_btiles, n_chunks),
            in_specs=in_specs,
            out_specs=out_spec,
            scratch_shapes=[
                pltpu.VMEM((Bt, 2 * H), f32),          # [h0 | h1] state
                pltpu.VMEM((C * Bt, 8 * H), f32),      # chunk input projection
            ],
        ),
        compiler_params=pltpu.CompilerParams(
            dimension_semantics=("parallel", "arbitrary"),
            vmem_limit_bytes=32 * 1024 * 1024,
        ),
    )(x_tm, w_gi08, b8, w_big, bn_scale, bn_shift,
      params["lin_w"], params["lin_b"])

    return out[:B, 0]  # (B,)


# ---------------------------------------------------------------------------
# Parameter init + pure-JAX reference (for the sanity check)
# ---------------------------------------------------------------------------
def init_params(key, alphabet_size):
    """Deterministic parameter init mimicking PyTorch default shapes/scales."""
    H = HIDDEN
    k = 1.0 / jnp.sqrt(jnp.float32(H))
    keys = jax.random.split(key, 12)

    def u(kk, shape):
        return jax.random.uniform(kk, shape, jnp.float32, -k, k)

    return {
        # layer 0: input size = alphabet_size; stored pre-transposed (in, 3H)
        "w_ih0": u(keys[0], (alphabet_size, 3 * H)),
        "w_hh0": u(keys[1], (H, 3 * H)),
        "b_ih0": u(keys[2], (1, 3 * H)),
        "b_hh0": u(keys[3], (1, 3 * H)),
        # layer 1: input size = H
        "w_ih1": u(keys[4], (H, 3 * H)),
        "w_hh1": u(keys[5], (H, 3 * H)),
        "b_ih1": u(keys[6], (1, 3 * H)),
        "b_hh1": u(keys[7], (1, 3 * H)),
        # BatchNorm1d(H) eval-mode params / running stats
        "bn_gamma": jnp.ones((1, H), jnp.float32),
        "bn_beta": jnp.zeros((1, H), jnp.float32),
        "bn_mean": jnp.zeros((1, H), jnp.float32),
        "bn_var": jnp.ones((1, H), jnp.float32),
        # Linear(H, 1), stored pre-transposed (H, 1)
        "lin_w": u(keys[8], (H, 1)),
        "lin_b": u(keys[9], (1, 1)),
    }


def reference_forward(x, params):
    """Pure-JAX reference of the same forward pass."""
    B, T, A = x.shape
    H = HIDDEN

    def cell(x_t, h, w_ih, w_hh, b_ih, b_hh):
        gi = x_t @ w_ih + b_ih
        gh = h @ w_hh + b_hh
        r = jax.nn.sigmoid(gi[:, :H] + gh[:, :H])
        z = jax.nn.sigmoid(gi[:, H:2 * H] + gh[:, H:2 * H])
        n = jnp.tanh(gi[:, 2 * H:] + r * gh[:, 2 * H:])
        return (1.0 - z) * n + z * h

    h0 = jnp.zeros((B, H), jnp.float32)
    h1 = jnp.zeros((B, H), jnp.float32)
    for t in range(T):
        h0 = cell(x[:, t, :], h0, params["w_ih0"], params["w_hh0"],
                  params["b_ih0"], params["b_hh0"])
        h1 = cell(h0, h1, params["w_ih1"], params["w_hh1"],
                  params["b_ih1"], params["b_hh1"])
    y = (h1 - params["bn_mean"]) * lax.rsqrt(params["bn_var"] + BN_EPS)
    y = y * params["bn_gamma"] + params["bn_beta"]
    y = jnp.where(y >= 0.0, y, RRELU_SLOPE * y)
    logits = y @ params["lin_w"] + params["lin_b"]
    return jax.nn.sigmoid(logits)[:, 0]


if __name__ == "__main__":
    ALPHABET = 32
    B, T = 2, 8

    key = jax.random.PRNGKey(0)
    k_x, k_p = jax.random.split(key)
    x = jax.random.normal(k_x, (B, T, ALPHABET), jnp.float32)
    params = init_params(k_p, ALPHABET)

    out = jax.block_until_ready(sentiment_rnn_forward(x, params))
    ref = jax.block_until_ready(reference_forward(x, params))

    assert out.shape == (B,), out.shape
    assert jnp.allclose(out, ref, atol=1e-5, rtol=1e-5), (out, ref)

    print("KERNEL_OK")
</pallas_src>

<mosaic_0001>
module attributes {stable_mosaic.version = 11 : i64} {
  func.func @kernel(%arg0: i32, %arg1: i32, %arg2: memref<8x8x32xf32, #tpu.memory_space<vmem>>, %arg3: memref<32x512xf32, #tpu.memory_space<vmem>>, %arg4: memref<1x512xf32, #tpu.memory_space<vmem>>, %arg5: memref<128x512xf32, #tpu.memory_space<vmem>>, %arg6: memref<1x64xf32, #tpu.memory_space<vmem>>, %arg7: memref<1x64xf32, #tpu.memory_space<vmem>>, %arg8: memref<64x1xf32, #tpu.memory_space<vmem>>, %arg9: memref<1x1xf32, #tpu.memory_space<vmem>>, %arg10: memref<8x1xf32, #tpu.memory_space<vmem>>, %arg11: memref<8x128xf32, #tpu.memory_space<vmem>>, %arg12: memref<64x512xf32, #tpu.memory_space<vmem>>) attributes {dimension_semantics = [#tpu.dimension_semantics<parallel>, #tpu.dimension_semantics<arbitrary>], iteration_bounds = array<i64: 1, 1>, scalar_prefetch = 0 : i64, scratch_operands = 2 : i64, tpu.core_type = #tpu.core_type<tc>, window_params = [{transform_indices = @transform_0, window_bounds = array<i64: 8, 8, 32>}, {pipeline_mode = #tpu.pipeline_mode<synchronous>, transform_indices = @transform_1, window_bounds = array<i64: 32, 512>}, {pipeline_mode = #tpu.pipeline_mode<synchronous>, transform_indices = @transform_2, window_bounds = array<i64: 1, 512>}, {pipeline_mode = #tpu.pipeline_mode<synchronous>, transform_indices = @transform_3, window_bounds = array<i64: 128, 512>}, {pipeline_mode = #tpu.pipeline_mode<synchronous>, transform_indices = @transform_4, window_bounds = array<i64: 1, 64>}, {pipeline_mode = #tpu.pipeline_mode<synchronous>, transform_indices = @transform_5, window_bounds = array<i64: 1, 64>}, {pipeline_mode = #tpu.pipeline_mode<synchronous>, transform_indices = @transform_6, window_bounds = array<i64: 64, 1>}, {pipeline_mode = #tpu.pipeline_mode<synchronous>, transform_indices = @transform_7, window_bounds = array<i64: 1, 1>}, {transform_indices = @transform_8, window_bounds = array<i64: 8, 1>}]} {
    %c0 = arith.constant 0 : index
    %c0_0 = arith.constant 0 : index
    %c0_1 = arith.constant 0 : index
    %0 = vector.load %arg2[%c0, %c0_0, %c0_1] : memref<8x8x32xf32, #tpu.memory_space<vmem>>, vector<8x8x32xf32>
    %1 = vector.shape_cast %0 : vector<8x8x32xf32> to vector<64x32xf32>
    %c0_2 = arith.constant 0 : index
    %c0_3 = arith.constant 0 : index
    %2 = vector.load %arg3[%c0_2, %c0_3] : memref<32x512xf32, #tpu.memory_space<vmem>>, vector<32x512xf32>
    %cst = arith.constant dense<0.000000e+00> : vector<64x512xf32>
    %3 = tpu.matmul %1, %2, %cst {dimension_numbers = #tpu.dot_dimension_numbers<[1], [0], [0], [1], [0, 0, 1, 1], [], []>} : vector<64x32xf32>, vector<32x512xf32>, vector<64x512xf32> -> vector<64x512xf32>
    %c0_4 = arith.constant 0 : index
    %c0_5 = arith.constant 0 : index
    %4 = vector.load %arg4[%c0_4, %c0_5] : memref<1x512xf32, #tpu.memory_space<vmem>>, vector<1x512xf32>
    %5 = vector.broadcast %4 : vector<1x512xf32> to vector<64x512xf32>
    %6 = arith.addf %3, %5 : vector<64x512xf32>
    %c0_6 = arith.constant 0 : index
    %c0_7 = arith.constant 0 : index
    %7 = vector.load %arg12[%c0_6, %c0_7] : memref<64x512xf32, #tpu.memory_space<vmem>>, vector<64x512xf32>
    tpu.vector_store %arg12[%c0_6, %c0_7], %6 {strides = array<i32>} : memref<64x512xf32, #tpu.memory_space<vmem>>, vector<64x512xf32>,
    %c0_8 = arith.constant 0 : index
    %c0_9 = arith.constant 0 : index
    %8 = vector.load %arg12[%c0_8, %c0_9] : memref<64x512xf32, #tpu.memory_space<vmem>>, vector<8x512xf32>
    %cst_10 = arith.constant 0.000000e+00 : f32
    %9 = vector.broadcast %cst_10 : f32 to vector<8x128xf32>
    %10 = vector.extract_strided_slice %8 {offsets = [0, 0], sizes = [8, 256], strides = [1, 1]} : vector<8x512xf32> to vector<8x256xf32>
    %11 = arith.negf %10 : vector<8x256xf32>
    %12 = math.exp %11 : vector<8x256xf32>
    %cst_11 = arith.constant 1.000000e+00 : f32
    %13 = vector.broadcast %cst_11 : f32 to vector<8x256xf32>
    %14 = arith.addf %13, %12 : vector<8x256xf32>
    %15 = arith.divf %13, %14 : vector<8x256xf32>
    %16 = vector.extract_strided_slice %15 {offsets = [0, 0], sizes = [8, 128], strides = [1, 1]} : vector<8x256xf32> to vector<8x128xf32>
    %17 = vector.extract_strided_slice %15 {offsets = [0, 128], sizes = [8, 128], strides = [1, 1]} : vector<8x256xf32> to vector<8x128xf32>
    %18 = vector.extract_strided_slice %8 {offsets = [0, 384], sizes = [8, 128], strides = [1, 1]} : vector<8x512xf32> to vector<8x128xf32>
    %19 = vector.extract_strided_slice %8 {offsets = [0, 256], sizes = [8, 128], strides = [1, 1]} : vector<8x512xf32> to vector<8x128xf32>
    %20 = arith.mulf %16, %19 : vector<8x128xf32>
    %21 = arith.addf %18, %20 : vector<8x128xf32>
    %22 = math.tanh %21 : vector<8x128xf32>
    %cst_12 = arith.constant 1.000000e+00 : f32
    %23 = vector.broadcast %cst_12 : f32 to vector<8x128xf32>
    %24 = arith.subf %23, %17 : vector<8x128xf32>
    %25 = arith.mulf %24, %22 : vector<8x128xf32>
    %26 = arith.mulf %17, %9 : vector<8x128xf32>
    %27 = arith.addf %25, %26 : vector<8x128xf32>
    %28 = vector.extract_strided_slice %27 {offsets = [0, 0], sizes = [8, 64], strides = [1, 1]} : vector<8x128xf32> to vector<8x64xf32>
    %cst_13 = arith.constant 0.000000e+00 : f32
    %29 = vector.broadcast %cst_13 : f32 to vector<8x64xf32>
    %30 = tpu.concatenate %28, %29 in 1 : vector<8x64xf32>, vector<8x64xf32> -> vector<8x128xf32>
    %c1_i32 = arith.constant 1 : i32
    %c8_i32 = arith.constant 8 : i32
    %31 = arith.muli %c1_i32, %c8_i32 : i32
    %32 = tpu.assume_multiple %31, 8 : i32
    %33 = arith.index_cast %32 : i32 to index
    %c0_14 = arith.constant 0 : index
    %34 = vector.load %arg12[%33, %c0_14] : memref<64x512xf32, #tpu.memory_space<vmem>>, vector<8x512xf32>
    %c0_15 = arith.constant 0 : index
    %c0_16 = arith.constant 0 : index
    %35 = vector.load %arg5[%c0_15, %c0_16] : memref<128x512xf32, #tpu.memory_space<vmem>>, vector<128x512xf32>
    %cst_17 = arith.constant dense<0.000000e+00> : vector<8x512xf32>
    %36 = tpu.matmul %30, %35, %cst_17 {dimension_numbers = #tpu.dot_dimension_numbers<[1], [0], [0], [1], [0, 0, 1, 1], [], []>} : vector<8x128xf32>, vector<128x512xf32>, vector<8x512xf32> -> vector<8x512xf32>
    %37 = arith.addf %34, %36 : vector<8x512xf32>
    %38 = vector.extract_strided_slice %37 {offsets = [0, 0], sizes = [8, 256], strides = [1, 1]} : vector<8x512xf32> to vector<8x256xf32>
    %39 = arith.negf %38 : vector<8x256xf32>
    %40 = math.exp %39 : vector<8x256xf32>
    %cst_18 = arith.constant 1.000000e+00 : f32
    %41 = vector.broadcast %cst_18 : f32 to vector<8x256xf32>
    %42 = arith.addf %41, %40 : vector<8x256xf32>
    %43 = arith.divf %41, %42 : vector<8x256xf32>
    %44 = vector.extract_strided_slice %43 {offsets = [0, 0], sizes = [8, 128], strides = [1, 1]} : vector<8x256xf32> to vector<8x128xf32>
    %45 = vector.extract_strided_slice %43 {offsets = [0, 128], sizes = [8, 128], strides = [1, 1]} : vector<8x256xf32> to vector<8x128xf32>
    %46 = vector.extract_strided_slice %37 {offsets = [0, 384], sizes = [8, 128], strides = [1, 1]} : vector<8x512xf32> to vector<8x128xf32>
    %47 = vector.extract_strided_slice %37 {offsets = [0, 256], sizes = [8, 128], strides = [1, 1]} : vector<8x512xf32> to vector<8x128xf32>
    %48 = arith.mulf %44, %47 : vector<8x128xf32>
    %49 = arith.addf %46, %48 : vector<8x128xf32>
    %50 = math.tanh %49 : vector<8x128xf32>
    %cst_19 = arith.constant 1.000000e+00 : f32
    %51 = vector.broadcast %cst_19 : f32 to vector<8x128xf32>
    %52 = arith.subf %51, %45 : vector<8x128xf32>
    %53 = arith.mulf %52, %50 : vector<8x128xf32>
    %54 = arith.mulf %45, %30 : vector<8x128xf32>
    %55 = arith.addf %53, %54 : vector<8x128xf32>
    %c2_i32 = arith.constant 2 : i32
    %c8_i32_20 = arith.constant 8 : i32
    %56 = arith.muli %c2_i32, %c8_i32_20 : i32
    %57 = tpu.assume_multiple %56, 8 : i32
    %58 = arith.index_cast %57 : i32 to index
    %c0_21 = arith.constant 0 : index
    %59 = vector.load %arg12[%58, %c0_21] : memref<64x512xf32, #tpu.memory_space<vmem>>, vector<8x512xf32>
    %c0_22 = arith.constant 0 : index
    %c0_23 = arith.constant 0 : index
    %60 = vector.load %arg5[%c0_22, %c0_23] : memref<128x512xf32, #tpu.memory_space<vmem>>, vector<128x512xf32>
    %cst_24 = arith.constant dense<0.000000e+00> : vector<8x512xf32>
    %61 = tpu.matmul %55, %60, %cst_24 {dimension_numbers = #tpu.dot_dimension_numbers<[1], [0], [0], [1], [0, 0, 1, 1], [], []>} : vector<8x128xf32>, vector<128x512xf32>, vector<8x512xf32> -> vector<8x512xf32>
    %62 = arith.addf %59, %61 : vector<8x512xf32>
    %63 = vector.extract_strided_slice %62 {offsets = [0, 0], sizes = [8, 256], strides = [1, 1]} : vector<8x512xf32> to vector<8x256xf32>
    %64 = arith.negf %63 : vector<8x256xf32>
    %65 = math.exp %64 : vector<8x256xf32>
    %cst_25 = arith.constant 1.000000e+00 : f32
    %66 = vector.broadcast %cst_25 : f32 to vector<8x256xf32>
    %67 = arith.addf %66, %65 : vector<8x256xf32>
    %68 = arith.divf %66, %67 : vector<8x256xf32>
    %69 = vector.extract_strided_slice %68 {offsets = [0, 0], sizes = [8, 128], strides = [1, 1]} : vector<8x256xf32> to vector<8x128xf32>
    %70 = vector.extract_strided_slice %68 {offsets = [0, 128], sizes = [8, 128], strides = [1, 1]} : vector<8x256xf32> to vector<8x128xf32>
    %71 = vector.extract_strided_slice %62 {offsets = [0, 384], sizes = [8, 128], strides = [1, 1]} : vector<8x512xf32> to vector<8x128xf32>
    %72 = vector.extract_strided_slice %62 {offsets = [0, 256], sizes = [8, 128], strides = [1, 1]} : vector<8x512xf32> to vector<8x128xf32>
    %73 = arith.mulf %69, %72 : vector<8x128xf32>
    %74 = arith.addf %71, %73 : vector<8x128xf32>
    %75 = math.tanh %74 : vector<8x128xf32>
    %cst_26 = arith.constant 1.000000e+00 : f32
    %76 = vector.broadcast %cst_26 : f32 to vector<8x128xf32>
    %77 = arith.subf %76, %70 : vector<8x128xf32>
    %78 = arith.mulf %77, %75 : vector<8x128xf32>
    %79 = arith.mulf %70, %55 : vector<8x128xf32>
    %80 = arith.addf %78, %79 : vector<8x128xf32>
    %c3_i32 = arith.constant 3 : i32
    %c8_i32_27 = arith.constant 8 : i32
    %81 = arith.muli %c3_i32, %c8_i32_27 : i32
    %82 = tpu.assume_multiple %81, 8 : i32
    %83 = arith.index_cast %82 : i32 to index
    %c0_28 = arith.constant 0 : index
    %84 = vector.load %arg12[%83, %c0_28] : memref<64x512xf32, #tpu.memory_space<vmem>>, vector<8x512xf32>
    %c0_29 = arith.constant 0 : index
    %c0_30 = arith.constant 0 : index
    %85 = vector.load %arg5[%c0_29, %c0_30] : memref<128x512xf32, #tpu.memory_space<vmem>>, vector<128x512xf32>
    %cst_31 = arith.constant dense<0.000000e+00> : vector<8x512xf32>
    %86 = tpu.matmul %80, %85, %cst_31 {dimension_numbers = #tpu.dot_dimension_numbers<[1], [0], [0], [1], [0, 0, 1, 1], [], []>} : vector<8x128xf32>, vector<128x512xf32>, vector<8x512xf32> -> vector<8x512xf32>
    %87 = arith.addf %84, %86 : vector<8x512xf32>
    %88 = vector.extract_strided_slice %87 {offsets = [0, 0], sizes = [8, 256], strides = [1, 1]} : vector<8x512xf32> to vector<8x256xf32>
    %89 = arith.negf %88 : vector<8x256xf32>
    %90 = math.exp %89 : vector<8x256xf32>
    %cst_32 = arith.constant 1.000000e+00 : f32
    %91 = vector.broadcast %cst_32 : f32 to vector<8x256xf32>
    %92 = arith.addf %91, %90 : vector<8x256xf32>
    %93 = arith.divf %91, %92 : vector<8x256xf32>
    %94 = vector.extract_strided_slice %93 {offsets = [0, 0], sizes = [8, 128], strides = [1, 1]} : vector<8x256xf32> to vector<8x128xf32>
    %95 = vector.extract_strided_slice %93 {offsets = [0, 128], sizes = [8, 128], strides = [1, 1]} : vector<8x256xf32> to vector<8x128xf32>
    %96 = vector.extract_strided_slice %87 {offsets = [0, 384], sizes = [8, 128], strides = [1, 1]} : vector<8x512xf32> to vector<8x128xf32>
    %97 = vector.extract_strided_slice %87 {offsets = [0, 256], sizes = [8, 128], strides = [1, 1]} : vector<8x512xf32> to vector<8x128xf32>
    %98 = arith.mulf %94, %97 : vector<8x128xf32>
    %99 = arith.addf %96, %98 : vector<8x128xf32>
    %100 = math.tanh %99 : vector<8x128xf32>
    %cst_33 = arith.constant 1.000000e+00 : f32
    %101 = vector.broadcast %cst_33 : f32 to vector<8x128xf32>
    %102 = arith.subf %101, %95 : vector<8x128xf32>
    %103 = arith.mulf %102, %100 : vector<8x128xf32>
    %104 = arith.mulf %95, %80 : vector<8x128xf32>
    %105 = arith.addf %103, %104 : vector<8x128xf32>
    %c4_i32 = arith.constant 4 : i32
    %c8_i32_34 = arith.constant 8 : i32
    %106 = arith.muli %c4_i32, %c8_i32_34 : i32
    %107 = tpu.assume_multiple %106, 8 : i32
    %108 = arith.index_cast %107 : i32 to index
    %c0_35 = arith.constant 0 : index
    %109 = vector.load %arg12[%108, %c0_35] : memref<64x512xf32, #tpu.memory_space<vmem>>, vector<8x512xf32>
    %c0_36 = arith.constant 0 : index
    %c0_37 = arith.constant 0 : index
    %110 = vector.load %arg5[%c0_36, %c0_37] : memref<128x512xf32, #tpu.memory_space<vmem>>, vector<128x512xf32>
    %cst_38 = arith.constant dense<0.000000e+00> : vector<8x512xf32>
    %111 = tpu.matmul %105, %110, %cst_38 {dimension_numbers = #tpu.dot_dimension_numbers<[1], [0], [0], [1], [0, 0, 1, 1], [], []>} : vector<8x128xf32>, vector<128x512xf32>, vector<8x512xf32> -> vector<8x512xf32>
    %112 = arith.addf %109, %111 : vector<8x512xf32>
    %113 = vector.extract_strided_slice %112 {offsets = [0, 0], sizes = [8, 256], strides = [1, 1]} : vector<8x512xf32> to vector<8x256xf32>
    %114 = arith.negf %113 : vector<8x256xf32>
    %115 = math.exp %114 : vector<8x256xf32>
    %cst_39 = arith.constant 1.000000e+00 : f32
    %116 = vector.broadcast %cst_39 : f32 to vector<8x256xf32>
    %117 = arith.addf %116, %115 : vector<8x256xf32>
    %118 = arith.divf %116, %117 : vector<8x256xf32>
    %119 = vector.extract_strided_slice %118 {offsets = [0, 0], sizes = [8, 128], strides = [1, 1]} : vector<8x256xf32> to vector<8x128xf32>
    %120 = vector.extract_strided_slice %118 {offsets = [0, 128], sizes = [8, 128], strides = [1, 1]} : vector<8x256xf32> to vector<8x128xf32>
    %121 = vector.extract_strided_slice %112 {offsets = [0, 384], sizes = [8, 128], strides = [1, 1]} : vector<8x512xf32> to vector<8x128xf32>
    %122 = vector.extract_strided_slice %112 {offsets = [0, 256], sizes = [8, 128], strides = [1, 1]} : vector<8x512xf32> to vector<8x128xf32>
    %123 = arith.mulf %119, %122 : vector<8x128xf32>
    %124 = arith.addf %121, %123 : vector<8x128xf32>
    %125 = math.tanh %124 : vector<8x128xf32>
    %cst_40 = arith.constant 1.000000e+00 : f32
    %126 = vector.broadcast %cst_40 : f32 to vector<8x128xf32>
    %127 = arith.subf %126, %120 : vector<8x128xf32>
    %128 = arith.mulf %127, %125 : vector<8x128xf32>
    %129 = arith.mulf %120, %105 : vector<8x128xf32>
    %130 = arith.addf %128, %129 : vector<8x128xf32>
    %c5_i32 = arith.constant 5 : i32
    %c8_i32_41 = arith.constant 8 : i32
    %131 = arith.muli %c5_i32, %c8_i32_41 : i32
    %132 = tpu.assume_multiple %131, 8 : i32
    %133 = arith.index_cast %132 : i32 to index
    %c0_42 = arith.constant 0 : index
    %134 = vector.load %arg12[%133, %c0_42] : memref<64x512xf32, #tpu.memory_space<vmem>>, vector<8x512xf32>
    %c0_43 = arith.constant 0 : index
    %c0_44 = arith.constant 0 : index
    %135 = vector.load %arg5[%c0_43, %c0_44] : memref<128x512xf32, #tpu.memory_space<vmem>>, vector<128x512xf32>
    %cst_45 = arith.constant dense<0.000000e+00> : vector<8x512xf32>
    %136 = tpu.matmul %130, %135, %cst_45 {dimension_numbers = #tpu.dot_dimension_numbers<[1], [0], [0], [1], [0, 0, 1, 1], [], []>} : vector<8x128xf32>, vector<128x512xf32>, vector<8x512xf32> -> vector<8x512xf32>
    %137 = arith.addf %134, %136 : vector<8x512xf32>
    %138 = vector.extract_strided_slice %137 {offsets = [0, 0], sizes = [8, 256], strides = [1, 1]} : vector<8x512xf32> to vector<8x256xf32>
    %139 = arith.negf %138 : vector<8x256xf32>
    %140 = math.exp %139 : vector<8x256xf32>
    %cst_46 = arith.constant 1.000000e+00 : f32
    %141 = vector.broadcast %cst_46 : f32 to vector<8x256xf32>
    %142 = arith.addf %141, %140 : vector<8x256xf32>
    %143 = arith.divf %141, %142 : vector<8x256xf32>
    %144 = vector.extract_strided_slice %143 {offsets = [0, 0], sizes = [8, 128], strides = [1, 1]} : vector<8x256xf32> to vector<8x128xf32>
    %145 = vector.extract_strided_slice %143 {offsets = [0, 128], sizes = [8, 128], strides = [1, 1]} : vector<8x256xf32> to vector<8x128xf32>
    %146 = vector.extract_strided_slice %137 {offsets = [0, 384], sizes = [8, 128], strides = [1, 1]} : vector<8x512xf32> to vector<8x128xf32>
    %147 = vector.extract_strided_slice %137 {offsets = [0, 256], sizes = [8, 128], strides = [1, 1]} : vector<8x512xf32> to vector<8x128xf32>
    %148 = arith.mulf %144, %147 : vector<8x128xf32>
    %149 = arith.addf %146, %148 : vector<8x128xf32>
    %150 = math.tanh %149 : vector<8x128xf32>
    %cst_47 = arith.constant 1.000000e+00 : f32
    %151 = vector.broadcast %cst_47 : f32 to vector<8x128xf32>
    %152 = arith.subf %151, %145 : vector<8x128xf32>
    %153 = arith.mulf %152, %150 : vector<8x128xf32>
    %154 = arith.mulf %145, %130 : vector<8x128xf32>
    %155 = arith.addf %153, %154 : vector<8x128xf32>
    %c6_i32 = arith.constant 6 : i32
    %c8_i32_48 = arith.constant 8 : i32
    %156 = arith.muli %c6_i32, %c8_i32_48 : i32
    %157 = tpu.assume_multiple %156, 8 : i32
    %158 = arith.index_cast %157 : i32 to index
    %c0_49 = arith.constant 0 : index
    %159 = vector.load %arg12[%158, %c0_49] : memref<64x512xf32, #tpu.memory_space<vmem>>, vector<8x512xf32>
    %c0_50 = arith.constant 0 : index
    %c0_51 = arith.constant 0 : index
    %160 = vector.load %arg5[%c0_50, %c0_51] : memref<128x512xf32, #tpu.memory_space<vmem>>, vector<128x512xf32>
    %cst_52 = arith.constant dense<0.000000e+00> : vector<8x512xf32>
    %161 = tpu.matmul %155, %160, %cst_52 {dimension_numbers = #tpu.dot_dimension_numbers<[1], [0], [0], [1], [0, 0, 1, 1], [], []>} : vector<8x128xf32>, vector<128x512xf32>, vector<8x512xf32> -> vector<8x512xf32>
    %162 = arith.addf %159, %161 : vector<8x512xf32>
    %163 = vector.extract_strided_slice %162 {offsets = [0, 0], sizes = [8, 256], strides = [1, 1]} : vector<8x512xf32> to vector<8x256xf32>
    %164 = arith.negf %163 : vector<8x256xf32>
    %165 = math.exp %164 : vector<8x256xf32>
    %cst_53 = arith.constant 1.000000e+00 : f32
    %166 = vector.broadcast %cst_53 : f32 to vector<8x256xf32>
    %167 = arith.addf %166, %165 : vector<8x256xf32>
    %168 = arith.divf %166, %167 : vector<8x256xf32>
    %169 = vector.extract_strided_slice %168 {offsets = [0, 0], sizes = [8, 128], strides = [1, 1]} : vector<8x256xf32> to vector<8x128xf32>
    %170 = vector.extract_strided_slice %168 {offsets = [0, 128], sizes = [8, 128], strides = [1, 1]} : vector<8x256xf32> to vector<8x128xf32>
    %171 = vector.extract_strided_slice %162 {offsets = [0, 384], sizes = [8, 128], strides = [1, 1]} : vector<8x512xf32> to vector<8x128xf32>
    %172 = vector.extract_strided_slice %162 {offsets = [0, 256], sizes = [8, 128], strides = [1, 1]} : vector<8x512xf32> to vector<8x128xf32>
    %173 = arith.mulf %169, %172 : vector<8x128xf32>
    %174 = arith.addf %171, %173 : vector<8x128xf32>
    %175 = math.tanh %174 : vector<8x128xf32>
    %cst_54 = arith.constant 1.000000e+00 : f32
    %176 = vector.broadcast %cst_54 : f32 to vector<8x128xf32>
    %177 = arith.subf %176, %170 : vector<8x128xf32>
    %178 = arith.mulf %177, %175 : vector<8x128xf32>
    %179 = arith.mulf %170, %155 : vector<8x128xf32>
    %180 = arith.addf %178, %179 : vector<8x128xf32>
    %c7_i32 = arith.constant 7 : i32
    %c8_i32_55 = arith.constant 8 : i32
    %181 = arith.muli %c7_i32, %c8_i32_55 : i32
    %182 = tpu.assume_multiple %181, 8 : i32
    %183 = arith.index_cast %182 : i32 to index
    %c0_56 = arith.constant 0 : index
    %184 = vector.load %arg12[%183, %c0_56] : memref<64x512xf32, #tpu.memory_space<vmem>>, vector<8x512xf32>
    %c0_57 = arith.constant 0 : index
    %c0_58 = arith.constant 0 : index
    %185 = vector.load %arg5[%c0_57, %c0_58] : memref<128x512xf32, #tpu.memory_space<vmem>>, vector<128x512xf32>
    %cst_59 = arith.constant dense<0.000000e+00> : vector<8x512xf32>
    %186 = tpu.matmul %180, %185, %cst_59 {dimension_numbers = #tpu.dot_dimension_numbers<[1], [0], [0], [1], [0, 0, 1, 1], [], []>} : vector<8x128xf32>, vector<128x512xf32>, vector<8x512xf32> -> vector<8x512xf32>
    %187 = arith.addf %184, %186 : vector<8x512xf32>
    %188 = vector.extract_strided_slice %187 {offsets = [0, 0], sizes = [8, 256], strides = [1, 1]} : vector<8x512xf32> to vector<8x256xf32>
    %189 = arith.negf %188 : vector<8x256xf32>
    %190 = math.exp %189 : vector<8x256xf32>
    %cst_60 = arith.constant 1.000000e+00 : f32
    %191 = vector.broadcast %cst_60 : f32 to vector<8x256xf32>
    %192 = arith.addf %191, %190 : vector<8x256xf32>
    %193 = arith.divf %191, %192 : vector<8x256xf32>
    %194 = vector.extract_strided_slice %193 {offsets = [0, 0], sizes = [8, 128], strides = [1, 1]} : vector<8x256xf32> to vector<8x128xf32>
    %195 = vector.extract_strided_slice %193 {offsets = [0, 128], sizes = [8, 128], strides = [1, 1]} : vector<8x256xf32> to vector<8x128xf32>
    %196 = vector.extract_strided_slice %187 {offsets = [0, 384], sizes = [8, 128], strides = [1, 1]} : vector<8x512xf32> to vector<8x128xf32>
    %197 = vector.extract_strided_slice %187 {offsets = [0, 256], sizes = [8, 128], strides = [1, 1]} : vector<8x512xf32> to vector<8x128xf32>
    %198 = arith.mulf %194, %197 : vector<8x128xf32>
    %199 = arith.addf %196, %198 : vector<8x128xf32>
    %200 = math.tanh %199 : vector<8x128xf32>
    %cst_61 = arith.constant 1.000000e+00 : f32
    %201 = vector.broadcast %cst_61 : f32 to vector<8x128xf32>
    %202 = arith.subf %201, %195 : vector<8x128xf32>
    %203 = arith.mulf %202, %200 : vector<8x128xf32>
    %204 = arith.mulf %195, %180 : vector<8x128xf32>
    %205 = arith.addf %203, %204 : vector<8x128xf32>
    %c7_i32_62 = arith.constant 7 : i32
    %c0_63 = arith.constant 0 : index
    %c0_64 = arith.constant 0 : index
    %206 = vector.load %arg11[%c0_63, %c0_64] : memref<8x128xf32, #tpu.memory_space<vmem>>, vector<8x128xf32>
    tpu.vector_store %arg11[%c0_63, %c0_64], %205 {strides = array<i32>} : memref<8x128xf32, #tpu.memory_space<vmem>>, vector<8x128xf32>,
    %c0_65 = arith.constant 0 : index
    %c0_66 = arith.constant 0 : index
    %207 = vector.load %arg11[%c0_65, %c0_66] : memref<8x128xf32, #tpu.memory_space<vmem>>, vector<8x128xf32>
    %c0_67 = arith.constant 0 : index
    %c0_68 = arith.constant 0 : index
    %208 = vector.load %arg5[%c0_67, %c0_68] : memref<128x512xf32, #tpu.memory_space<vmem>>, vector<128x512xf32>
    %cst_69 = arith.constant dense<0.000000e+00> : vector<8x512xf32>
    %209 = tpu.matmul %207, %208, %cst_69 {dimension_numbers = #tpu.dot_dimension_numbers<[1], [0], [0], [1], [0, 0, 1, 1], [], []>} : vector<8x128xf32>, vector<128x512xf32>, vector<8x512xf32> -> vector<8x512xf32>
    %c0_70 = arith.constant 0 : index
    %c0_71 = arith.constant 0 : index
    %210 = vector.load %arg4[%c0_70, %c0_71] : memref<1x512xf32, #tpu.memory_space<vmem>>, vector<1x512xf32>
    %211 = vector.shape_cast %210 : vector<1x512xf32> to vector<1x512xf32>
    %212 = vector.broadcast %211 : vector<1x512xf32> to vector<8x512xf32>
    %213 = arith.addf %209, %212 : vector<8x512xf32>
    %214 = vector.extract_strided_slice %213 {offsets = [0, 0], sizes = [8, 256], strides = [1, 1]} : vector<8x512xf32> to vector<8x256xf32>
    %215 = arith.negf %214 : vector<8x256xf32>
    %216 = math.exp %215 : vector<8x256xf32>
    %cst_72 = arith.constant 1.000000e+00 : f32
    %217 = vector.broadcast %cst_72 : f32 to vector<8x256xf32>
    %218 = arith.addf %217, %216 : vector<8x256xf32>
    %219 = arith.divf %217, %218 : vector<8x256xf32>
    %220 = vector.extract_strided_slice %219 {offsets = [0, 0], sizes = [8, 128], strides = [1, 1]} : vector<8x256xf32> to vector<8x128xf32>
    %221 = vector.extract_strided_slice %219 {offsets = [0, 128], sizes = [8, 128], strides = [1, 1]} : vector<8x256xf32> to vector<8x128xf32>
    %222 = vector.extract_strided_slice %213 {offsets = [0, 384], sizes = [8, 128], strides = [1, 1]} : vector<8x512xf32> to vector<8x128xf32>
    %223 = vector.extract_strided_slice %213 {offsets = [0, 256], sizes = [8, 128], strides = [1, 1]} : vector<8x512xf32> to vector<8x128xf32>
    %224 = arith.mulf %220, %223 : vector<8x128xf32>
    %225 = arith.addf %222, %224 : vector<8x128xf32>
    %226 = math.tanh %225 : vector<8x128xf32>
    %cst_73 = arith.constant 1.000000e+00 : f32
    %227 = vector.broadcast %cst_73 : f32 to vector<8x128xf32>
    %228 = arith.subf %227, %221 : vector<8x128xf32>
    %229 = arith.mulf %228, %226 : vector<8x128xf32>
    %230 = arith.mulf %221, %207 : vector<8x128xf32>
    %231 = arith.addf %229, %230 : vector<8x128xf32>
    %232 = vector.extract_strided_slice %231 {offsets = [0, 64], sizes = [8, 64], strides = [1, 1]} : vector<8x128xf32> to vector<8x64xf32>
    %c0_74 = arith.constant 0 : index
    %c0_75 = arith.constant 0 : index
    %233 = vector.load %arg6[%c0_74, %c0_75] : memref<1x64xf32, #tpu.memory_space<vmem>>, vector<1x64xf32>
    %234 = vector.broadcast %233 : vector<1x64xf32> to vector<8x64xf32>
    %235 = arith.mulf %232, %234 : vector<8x64xf32>
    %c0_76 = arith.constant 0 : index
    %c0_77 = arith.constant 0 : index
    %236 = vector.load %arg7[%c0_76, %c0_77] : memref<1x64xf32, #tpu.memory_space<vmem>>, vector<1x64xf32>
    %237 = vector.broadcast %236 : vector<1x64xf32> to vector<8x64xf32>
    %238 = arith.addf %235, %237 : vector<8x64xf32>
    %cst_78 = arith.constant 0.000000e+00 : f32
    %239 = vector.broadcast %cst_78 : f32 to vector<8x64xf32>
    %240 = arith.cmpf oge, %238, %239 : vector<8x64xf32>
    %cst_79 = arith.constant 0.229166672 : f32
    %241 = vector.broadcast %cst_79 : f32 to vector<8x64xf32>
    %242 = arith.mulf %241, %238 : vector<8x64xf32>
    %243 = arith.select %240, %238, %242 : vector<8x64xi1>, vector<8x64xf32>
    %c0_80 = arith.constant 0 : index
    %c0_81 = arith.constant 0 : index
    %244 = vector.load %arg8[%c0_80, %c0_81] : memref<64x1xf32, #tpu.memory_space<vmem>>, vector<64x1xf32>
    %cst_82 = arith.constant dense<0.000000e+00> : vector<8x1xf32>
    %245 = tpu.matmul %243, %244, %cst_82 {dimension_numbers = #tpu.dot_dimension_numbers<[1], [0], [0], [1], [0, 0, 1, 1], [], []>} : vector<8x64xf32>, vector<64x1xf32>, vector<8x1xf32> -> vector<8x1xf32>
    %c0_83 = arith.constant 0 : index
    %c0_84 = arith.constant 0 : index
    %246 = vector.load %arg9[%c0_83, %c0_84] : memref<1x1xf32, #tpu.memory_space<vmem>>, vector<1x1xf32>
    %247 = vector.broadcast %246 : vector<1x1xf32> to vector<8x1xf32>
    %248 = arith.addf %245, %247 : vector<8x1xf32>
    %249 = arith.negf %248 : vector<8x1xf32>
    %250 = math.exp %249 : vector<8x1xf32>
    %cst_85 = arith.constant 1.000000e+00 : f32
    %251 = vector.broadcast %cst_85 : f32 to vector<8x1xf32>
    %252 = arith.addf %251, %250 : vector<8x1xf32>
    %253 = arith.divf %251, %252 : vector<8x1xf32>
    %c0_86 = arith.constant 0 : index
    %c0_87 = arith.constant 0 : index
    %254 = vector.load %arg10[%c0_86, %c0_87] : memref<8x1xf32, #tpu.memory_space<vmem>>, vector<8x1xf32>
    tpu.vector_store %arg10[%c0_86, %c0_87], %253 {strides = array<i32>} : memref<8x1xf32, #tpu.memory_space<vmem>>, vector<8x1xf32>,
    return
  }
  func.func @transform_0(%arg0: i32, %arg1: i32) -> (i32, i32, i32) {
    %c0_i32 = arith.constant 0 : i32
    %c0_i32_0 = arith.constant 0 : i32
    return %arg1, %arg0, %c0_i32 : i32, i32, i32
  }
  func.func @transform_1(%arg0: i32, %arg1: i32) -> (i32, i32) {
    %c0_i32 = arith.constant 0 : i32
    %c0_i32_0 = arith.constant 0 : i32
    %c0_i32_1 = arith.constant 0 : i32
    return %c0_i32, %c0_i32_0 : i32, i32
  }
  func.func @transform_2(%arg0: i32, %arg1: i32) -> (i32, i32) {
    %c0_i32 = arith.constant 0 : i32
    %c0_i32_0 = arith.constant 0 : i32
    %c0_i32_1 = arith.constant 0 : i32
    return %c0_i32, %c0_i32_0 : i32, i32
  }
  func.func @transform_3(%arg0: i32, %arg1: i32) -> (i32, i32) {
    %c0_i32 = arith.constant 0 : i32
    %c0_i32_0 = arith.constant 0 : i32
    %c0_i32_1 = arith.constant 0 : i32
    return %c0_i32, %c0_i32_0 : i32, i32
  }
  func.func @transform_4(%arg0: i32, %arg1: i32) -> (i32, i32) {
    %c0_i32 = arith.constant 0 : i32
    %c0_i32_0 = arith.constant 0 : i32
    %c0_i32_1 = arith.constant 0 : i32
    return %c0_i32, %c0_i32_0 : i32, i32
  }
  func.func @transform_5(%arg0: i32, %arg1: i32) -> (i32, i32) {
    %c0_i32 = arith.constant 0 : i32
    %c0_i32_0 = arith.constant 0 : i32
    %c0_i32_1 = arith.constant 0 : i32
    return %c0_i32, %c0_i32_0 : i32, i32
  }
  func.func @transform_6(%arg0: i32, %arg1: i32) -> (i32, i32) {
    %c0_i32 = arith.constant 0 : i32
    %c0_i32_0 = arith.constant 0 : i32
    %c0_i32_1 = arith.constant 0 : i32
    return %c0_i32, %c0_i32_0 : i32, i32
  }
  func.func @transform_7(%arg0: i32, %arg1: i32) -> (i32, i32) {
    %c0_i32 = arith.constant 0 : i32
    %c0_i32_0 = arith.constant 0 : i32
    %c0_i32_1 = arith.constant 0 : i32
    return %c0_i32, %c0_i32_0 : i32, i32
  }
  func.func @transform_8(%arg0: i32, %arg1: i32) -> (i32, i32) {
    %c0_i32 = arith.constant 0 : i32
    %c0_i32_0 = arith.constant 0 : i32
    return %arg0, %c0_i32 : i32, i32
  }
}

</mosaic_0001>

<llo_original>
// kernel: sentiment_rnn_forward.1
$region0: #{sentiment_rnn_forward.1}
  #allocation0 [shape = 'u32[]', space=smem, size = 0x4, offset = 0x4, fixed_abs, tag = 'smem constant byte address 0x4 - core index']
  #allocation1 [shape = 'u32[144,128]{1,0:T(1,128)}', space=vmem, size = 0x12000, scoped, tag = 'internal scratch']
  #allocation2 [shape = 'f32[8,128]{1,0:T(8,128)}', space=vmem, size = 0x1000, scoped, tag = 'scratch operand']
  #allocation3 [shape = 'f32[64,512]{1,0:T(8,128)}', space=vmem, size = 0x20000, scoped, tag = 'scratch operand']
  #allocation4 [shape = 'f32[1,1]{1,0:T(1,128)S(1)}', space=vmem, size = 0x200, scoped, tag = 'scoped memory for sentiment_rnn_forward.1']
  %s0 = inlined_call_operand.vmem [shape: f32[8,8,32], index: 0, kind: input, shape index: {}]
  %s1 = inlined_call_operand.vmem [shape: f32[32,512], index: 1, kind: input, shape index: {}]
  %s2 = inlined_call_operand.vmem [shape: f32[1,512], index: 2, kind: input, shape index: {}]
  %s3 = inlined_call_operand.vmem [shape: f32[128,512], index: 3, kind: input, shape index: {}]
  %s4 = inlined_call_operand.vmem [shape: f32[1,64], index: 4, kind: input, shape index: {}]
  %s5 = inlined_call_operand.vmem [shape: f32[1,64], index: 5, kind: input, shape index: {}]
  %s6 = inlined_call_operand.vmem [shape: f32[64,1], index: 6, kind: input, shape index: {}]
  %s7 = inlined_call_operand.<no memory space> [shape: f32[1,1], index: 7, kind: input, shape index: {}]
  %s8 = inlined_call_operand.vmem [shape: f32[8,1], index: 8, kind: output, shape index: {}]
  %s9 = sld [smem:[#allocation0]]
  $region42: #{sentiment_rnn_forward.1} parent=0
    _
  %s11 = ssub.s32 1, %s9
  %s12 = scalar_select 0, %s11, %s9
  %v13 = vstv %s7
  %14 = vst [vmem:[#allocation4] sm:$0x1] %v13
  // Predicated region
  $region2: #{sentiment_rnn_forward.1} parent=0 // pred_check
    _
  $region3: #{sentiment_rnn_forward.1} parent=0 // pred_check_branch
    %16 = sbr.rel (0) target = $region5
  $region4: #{sentiment_rnn_forward.1} parent=0 // pred_region
    _
  $region5: #{sentiment_rnn_forward.1} parent=0 // pred_fallthru
    _
  // Predicated region
  $region6: #{sentiment_rnn_forward.1} parent=0 // pred_check
    _
  $region7: #{sentiment_rnn_forward.1} parent=0 // pred_check_branch
    %18 = sbr.rel (0) target = $region9
  $region8: #{sentiment_rnn_forward.1} parent=0 // pred_region
    _
  $region9: #{sentiment_rnn_forward.1} parent=0 // pred_fallthru
    _
  // Predicated region
  $region10: #{sentiment_rnn_forward.1} parent=0 // pred_check
    _
  $region11: #{sentiment_rnn_forward.1} parent=0 // pred_check_branch
    %20 = sbr.rel (0) target = $region13
  $region12: #{sentiment_rnn_forward.1} parent=0 // pred_region
    _
  $region13: #{sentiment_rnn_forward.1} parent=0 // pred_fallthru
    _
  // Predicated region
  $region14: #{sentiment_rnn_forward.1} parent=0 // pred_check
    _
  $region15: #{sentiment_rnn_forward.1} parent=0 // pred_check_branch
    %22 = sbr.rel (0) target = $region17
  $region16: #{sentiment_rnn_forward.1} parent=0 // pred_region
    _
  $region17: #{sentiment_rnn_forward.1} parent=0 // pred_fallthru
    _
  // Predicated region
  $region18: #{sentiment_rnn_forward.1} parent=0 // pred_check
    _
  $region19: #{sentiment_rnn_forward.1} parent=0 // pred_check_branch
    %24 = sbr.rel (0) target = $region21
  $region20: #{sentiment_rnn_forward.1} parent=0 // pred_region
    _
  $region21: #{sentiment_rnn_forward.1} parent=0 // pred_fallthru
    _
  // Predicated region
  $region22: #{sentiment_rnn_forward.1} parent=0 // pred_check
    _
  $region23: #{sentiment_rnn_forward.1} parent=0 // pred_check_branch
    %26 = sbr.rel (0) target = $region25
  $region24: #{sentiment_rnn_forward.1} parent=0 // pred_region
    _
  $region25: #{sentiment_rnn_forward.1} parent=0 // pred_fallthru
    _
  // Predicated region
  $region26: #{sentiment_rnn_forward.1} parent=0 // pred_check
    _
  $region27: #{sentiment_rnn_forward.1} parent=0 // pred_check_branch
    %28 = sbr.rel (0) target = $region29
  $region28: #{sentiment_rnn_forward.1} parent=0 // pred_region
    _
  $region29: #{sentiment_rnn_forward.1} parent=0 // pred_fallthru
    _
  // Predicated region
  $region30: #{sentiment_rnn_forward.1} parent=0 // pred_check
    _
  $region31: #{sentiment_rnn_forward.1} parent=0 // pred_check_branch
    %30 = sbr.rel (0) target = $region33
  $region32: #{sentiment_rnn_forward.1} parent=0 // pred_region
    _
  $region33: #{sentiment_rnn_forward.1} parent=0 // pred_fallthru
    _
  %v31 = vld [vmem:[%s0] sm:$0xff]
  %v32 = vld [vmem:[%s0 + $0x8] sm:$0xff]
  %v33 = vld [vmem:[%s0 + $0x10] sm:$0xff]
  %v34 = vld [vmem:[%s0 + $0x18] sm:$0xff]
  %v35 = vld [vmem:[%s0 + $0x20] sm:$0xff]
  %v36 = vld [vmem:[%s0 + $0x28] sm:$0xff]
  %v37 = vld [vmem:[%s0 + $0x30] sm:$0xff]
  %v38 = vld [vmem:[%s0 + $0x38] sm:$0xff]
  %v39 = vld [vmem:[%s1] sm:$0xff]
  %v40 = vld [vmem:[%s1 + $0x8] sm:$0xff]
  %v41 = vld [vmem:[%s1 + $0x10] sm:$0xff]
  %v42 = vld [vmem:[%s1 + $0x18] sm:$0xff]
  %v43 = vld [vmem:[%s1 + $0x20] sm:$0xff]
  %v44 = vld [vmem:[%s1 + $0x28] sm:$0xff]
  %v45 = vld [vmem:[%s1 + $0x30] sm:$0xff]
  %v46 = vld [vmem:[%s1 + $0x38] sm:$0xff]
  %v47 = vld [vmem:[%s1 + $0x40] sm:$0xff]
  %v48 = vld [vmem:[%s1 + $0x48] sm:$0xff]
  %v49 = vld [vmem:[%s1 + $0x50] sm:$0xff]
  %v50 = vld [vmem:[%s1 + $0x58] sm:$0xff]
  %v51 = vld [vmem:[%s1 + $0x60] sm:$0xff]
  %v52 = vld [vmem:[%s1 + $0x68] sm:$0xff]
  %v53 = vld [vmem:[%s1 + $0x70] sm:$0xff]
  %v54 = vld [vmem:[%s1 + $0x78] sm:$0xff]
  %v55 = vld [vmem:[%s2] sm:$0xf]
  %v57 = vlaneseq
  %v58 = vshrl.u32 %v57, 7
  %v59 = vsub.s32 0, %v58
  %v60 = vrot.slane %v55, %v59
  %v61 = vlaneseq
  %v62 = vshrl.u32 %v61, 7
  %v63 = vsub.s32 1, %v62
  %v64 = vrot.slane %v55, %v63
  %v65 = vlaneseq
  %v66 = vshrl.u32 %v65, 7
  %v67 = vsub.s32 2, %v66
  %v68 = vrot.slane %v55, %v67
  %v69 = vlaneseq
  %v70 = vshrl.u32 %v69, 7
  %v71 = vsub.s32 3, %v70
  %v72 = vrot.slane %v55, %v71
  %vm77 = vcmask 261120
  %v79 = vsel %vm77, %v31, 0
  %v82 = vsel %vm77, %v32, 0
  %v85 = vsel %vm77, %v33, 0
  %v88 = vsel %vm77, %v34, 0
  %v91 = vsel %vm77, %v35, 0
  %v94 = vsel %vm77, %v36, 0
  %v97 = vsel %vm77, %v37, 0
  %v100 = vsel %vm77, %v38, 0
  %102 = vmatprep.subr.mxu0 0.0
  %103 = vmatpush1.msra.mxu0 0.0
  %104 = vmatprep.subr.mxu0 0.0
  %105 = vmatpush1.msra.mxu0 0.0
  %106 = vmatprep.subr.mxu0 0.0
  %107 = vmatpush1.msra.mxu0 0.0
  %108 = vmatprep.subr.mxu0 0.0
  %109 = vmatpush1.msra.mxu0 0.0
  %110 = vmatprep.subr.mxu0 0.0
  %111 = vmatpush1.msra.mxu0 0.0
  %112 = vmatprep.subr.mxu0 0.0
  %113 = vmatpush1.msra.mxu0 0.0
  %114 = vmatprep.subr.mxu0 0.0
  %115 = vmatpush1.msra.mxu0 0.0
  %116 = vmatprep.subr.mxu0 0.0
  %117 = vmatpush1.msra.mxu0 0.0
  %118 = vmatprep.subr.mxu0 0.0
  %119 = vmatpush1.msra.mxu0 0.0
  %120 = vmatprep.subr.mxu0 0.0
  %121 = vmatpush1.msra.mxu0 0.0
  %122 = vmatprep.subr.mxu0 0.0
  %123 = vmatpush1.msra.mxu0 0.0
  %124 = vmatprep.subr.mxu0 0.0
  %125 = vmatpush1.msra.mxu0 0.0
  %126 = vmatprep.subr.mxu0 %v52
  %127 = vmatpush1.msra.mxu0 %v51
  %128 = vmatprep.subr.mxu0 %v48
  %129 = vmatpush1.msra.mxu0 %v47
  %130 = vmatprep.subr.mxu0 %v44
  %131 = vmatpush1.msra.mxu0 %v43
  %132 = vmatprep.subr.mxu0 %v40
  %133 = vmatpush1.msra.mxu0 %v39
  %134 = vmatprep.subr.mxu0 0.0
  %135 = vmatpush2.msra.mxu0 0.0
  %136 = vmatprep.subr.mxu0 0.0
  %137 = vmatpush2.msra.mxu0 0.0
  %138 = vmatprep.subr.mxu0 0.0
  %139 = vmatpush2.msra.mxu0 0.0
  %140 = vmatprep.subr.mxu0 0.0
  %141 = vmatpush2.msra.mxu0 0.0
  %142 = vmatprep.subr.mxu0 0.0
  %143 = vmatpush2.msra.mxu0 0.0
  %144 = vmatprep.subr.mxu0 0.0
  %145 = vmatpush2.msra.mxu0 0.0
  %146 = vmatprep.subr.mxu0 0.0
  %147 = vmatpush2.msra.mxu0 0.0
  %148 = vmatprep.subr.mxu0 0.0
  %149 = vmatpush2.msra.mxu0 0.0
  %150 = vmatprep.subr.mxu0 0.0
  %151 = vmatpush2.msra.mxu0 0.0
  %152 = vmatprep.subr.mxu0 0.0
  %153 = vmatpush2.msra.mxu0 0.0
  %154 = vmatprep.subr.mxu0 0.0
  %155 = vmatpush2.msra.mxu0 0.0
  %156 = vmatprep.subr.mxu0 0.0
  %157 = vmatpush2.msra.mxu0 0.0
  %158 = vmatprep.subr.mxu0 0.0
  %159 = vmatpush2.msra.mxu0 0.0
  %160 = vmatprep.subr.mxu0 0.0
  %161 = vmatpush2.msra.mxu0 0.0
  %162 = vmatprep.subr.mxu0 0.0
  %163 = vmatpush2.msra.mxu0 0.0
  %164 = vmatprep.subr.mxu0 0.0
  %165 = vmatpush2.msra.mxu0 0.0
  %166 = vmatprep.mubr.f32.mxu0 0.0
  %167 = vmatmul.mubr.f32.gmra.mxu0 %v79
  %v168 = vpop.f32.mrf.mxu0
  %v169 = vadd.f32 %v60, %v168
  %v170 = vpop.f32.mrf.mxu0
  %v171 = vadd.f32 %v64, %v170
  %172 = vmatprep.mubr.f32.mxu0 0.0
  %173 = vmatmul.mubr.f32.gmra.mxu0 %v82
  %v174 = vpop.f32.mrf.mxu0
  %v175 = vadd.f32 %v60, %v174
  %v176 = vpop.f32.mrf.mxu0
  %v177 = vadd.f32 %v64, %v176
  %178 = vmatprep.mubr.f32.mxu0 0.0
  %179 = vmatmul.mubr.f32.gmra.mxu0 %v85
  %v180 = vpop.f32.mrf.mxu0
  %v181 = vadd.f32 %v60, %v180
  %v182 = vpop.f32.mrf.mxu0
  %v183 = vadd.f32 %v64, %v182
  %184 = vmatprep.mubr.f32.mxu0 0.0
  %185 = vmatmul.mubr.f32.gmra.mxu0 %v88
  %v186 = vpop.f32.mrf.mxu0
  %v187 = vadd.f32 %v60, %v186
  %v188 = vpop.f32.mrf.mxu0
  %v189 = vadd.f32 %v64, %v188
  %190 = vmatprep.mubr.f32.mxu0 0.0
  %191 = vmatmul.mubr.f32.gmra.mxu0 %v91
  %v192 = vpop.f32.mrf.mxu0
  %v193 = vadd.f32 %v60, %v192
  %v194 = vpop.f32.mrf.mxu0
  %v195 = vadd.f32 %v64, %v194
  %196 = vmatprep.mubr.f32.mxu0 0.0
  %197 = vmatmul.mubr.f32.gmra.mxu0 %v94
  %v198 = vpop.f32.mrf.mxu0
  %v199 = vadd.f32 %v60, %v198
  %v200 = vpop.f32.mrf.mxu0
  %v201 = vadd.f32 %v64, %v200
  %202 = vmatprep.mubr.f32.mxu0 0.0
  %203 = vmatmul.mubr.f32.gmra.mxu0 %v97
  %v204 = vpop.f32.mrf.mxu0
  %v205 = vadd.f32 %v60, %v204
  %v206 = vpop.f32.mrf.mxu0
  %v207 = vadd.f32 %v64, %v206
  %208 = vmatprep.mubr.f32.mxu0 0.0
  %209 = vmatmul.mubr.f32.gmra.mxu0 %v100
  %v210 = vpop.f32.mrf.mxu0
  %v211 = vadd.f32 %v60, %v210
  %v212 = vpop.f32.mrf.mxu0
  %v213 = vadd.f32 %v64, %v212
  %214 = vdwg.mxu0
  %215 = vmatprep.subr.mxu0 0.0
  %216 = vmatpush1.msra.mxu0 0.0
  %217 = vmatprep.subr.mxu0 0.0
  %218 = vmatpush1.msra.mxu0 0.0
  %219 = vmatprep.subr.mxu0 0.0
  %220 = vmatpush1.msra.mxu0 0.0
  %221 = vmatprep.subr.mxu0 0.0
  %222 = vmatpush1.msra.mxu0 0.0
  %223 = vmatprep.subr.mxu0 0.0
  %224 = vmatpush1.msra.mxu0 0.0
  %225 = vmatprep.subr.mxu0 0.0
  %226 = vmatpush1.msra.mxu0 0.0
  %227 = vmatprep.subr.mxu0 0.0
  %228 = vmatpush1.msra.mxu0 0.0
  %229 = vmatprep.subr.mxu0 0.0
  %230 = vmatpush1.msra.mxu0 0.0
  %231 = vmatprep.subr.mxu0 0.0
  %232 = vmatpush1.msra.mxu0 0.0
  %233 = vmatprep.subr.mxu0 0.0
  %234 = vmatpush1.msra.mxu0 0.0
  %235 = vmatprep.subr.mxu0 0.0
  %236 = vmatpush1.msra.mxu0 0.0
  %237 = vmatprep.subr.mxu0 0.0
  %238 = vmatpush1.msra.mxu0 0.0
  %239 = vmatprep.subr.mxu0 %v54
  %240 = vmatpush1.msra.mxu0 %v53
  %241 = vmatprep.subr.mxu0 %v50
  %242 = vmatpush1.msra.mxu0 %v49
  %243 = vmatprep.subr.mxu0 %v46
  %244 = vmatpush1.msra.mxu0 %v45
  %245 = vmatprep.subr.mxu0 %v42
  %246 = vmatpush1.msra.mxu0 %v41
  %247 = vmatprep.subr.mxu0 0.0
  %248 = vmatpush2.msra.mxu0 0.0
  %249 = vmatprep.subr.mxu0 0.0
  %250 = vmatpush2.msra.mxu0 0.0
  %251 = vmatprep.subr.mxu0 0.0
  %252 = vmatpush2.msra.mxu0 0.0
  %253 = vmatprep.subr.mxu0 0.0
  %254 = vmatpush2.msra.mxu0 0.0
  %255 = vmatprep.subr.mxu0 0.0
  %256 = vmatpush2.msra.mxu0 0.0
  %257 = vmatprep.subr.mxu0 0.0
  %258 = vmatpush2.msra.mxu0 0.0
  %259 = vmatprep.subr.mxu0 0.0
  %260 = vmatpush2.msra.mxu0 0.0
  %261 = vmatprep.subr.mxu0 0.0
  %262 = vmatpush2.msra.mxu0 0.0
  %263 = vmatprep.subr.mxu0 0.0
  %264 = vmatpush2.msra.mxu0 0.0
  %265 = vmatprep.subr.mxu0 0.0
  %266 = vmatpush2.msra.mxu0 0.0
  %267 = vmatprep.subr.mxu0 0.0
  %268 = vmatpush2.msra.mxu0 0.0
  %269 = vmatprep.subr.mxu0 0.0
  %270 = vmatpush2.msra.mxu0 0.0
  %271 = vmatprep.subr.mxu0 0.0
  %272 = vmatpush2.msra.mxu0 0.0
  %273 = vmatprep.subr.mxu0 0.0
  %274 = vmatpush2.msra.mxu0 0.0
  %275 = vmatprep.subr.mxu0 0.0
  %276 = vmatpush2.msra.mxu0 0.0
  %277 = vmatprep.subr.mxu0 0.0
  %278 = vmatpush2.msra.mxu0 0.0
  %279 = vmatprep.mubr.f32.mxu0 0.0
  %280 = vmatmul.mubr.f32.gmra.mxu0 %v79
  %v281 = vpop.f32.mrf.mxu0
  %v282 = vadd.f32 %v68, %v281
  %v283 = vpop.f32.mrf.mxu0
  %v284 = vadd.f32 %v72, %v283
  %285 = vmatprep.mubr.f32.mxu0 0.0
  %286 = vmatmul.mubr.f32.gmra.mxu0 %v82
  %v287 = vpop.f32.mrf.mxu0
  %v288 = vadd.f32 %v68, %v287
  %v289 = vpop.f32.mrf.mxu0
  %v290 = vadd.f32 %v72, %v289
  %291 = vmatprep.mubr.f32.mxu0 0.0
  %292 = vmatmul.mubr.f32.gmra.mxu0 %v85
  %v293 = vpop.f32.mrf.mxu0
  %v294 = vadd.f32 %v68, %v293
  %v295 = vpop.f32.mrf.mxu0
  %v296 = vadd.f32 %v72, %v295
  %297 = vmatprep.mubr.f32.mxu0 0.0
  %298 = vmatmul.mubr.f32.gmra.mxu0 %v88
  %v299 = vpop.f32.mrf.mxu0
  %v300 = vadd.f32 %v68, %v299
  %v301 = vpop.f32.mrf.mxu0
  %v302 = vadd.f32 %v72, %v301
  %303 = vmatprep.mubr.f32.mxu0 0.0
  %304 = vmatmul.mubr.f32.gmra.mxu0 %v91
  %v305 = vpop.f32.mrf.mxu0
  %v306 = vadd.f32 %v68, %v305
  %v307 = vpop.f32.mrf.mxu0
  %v308 = vadd.f32 %v72, %v307
  %309 = vmatprep.mubr.f32.mxu0 0.0
  %310 = vmatmul.mubr.f32.gmra.mxu0 %v94
  %v311 = vpop.f32.mrf.mxu0
  %v312 = vadd.f32 %v68, %v311
  %v313 = vpop.f32.mrf.mxu0
  %v314 = vadd.f32 %v72, %v313
  %315 = vmatprep.mubr.f32.mxu0 0.0
  %316 = vmatmul.mubr.f32.gmra.mxu0 %v97
  %v317 = vpop.f32.mrf.mxu0
  %v318 = vadd.f32 %v68, %v317
  %v319 = vpop.f32.mrf.mxu0
  %v320 = vadd.f32 %v72, %v319
  %321 = vmatprep.mubr.f32.mxu0 0.0
  %322 = vmatmul.mubr.f32.gmra.mxu0 %v100
  %v323 = vpop.f32.mrf.mxu0
  %v324 = vadd.f32 %v68, %v323
  %v325 = vpop.f32.mrf.mxu0
  %v326 = vadd.f32 %v72, %v325
  %327 = vdwg.mxu0
  %328 = vst [vmem:[#allocation3] sm:$0xff] %v169
  %329 = vst [vmem:[#allocation3 + $0x8] sm:$0xff] %v171
  %330 = vst [vmem:[#allocation3 + $0x10] sm:$0xff] %v282
  %331 = vst [vmem:[#allocation3 + $0x18] sm:$0xff] %v284
  %332 = vst [vmem:[#allocation3 + $0x20] sm:$0xff] %v175
  %333 = vst [vmem:[#allocation3 + $0x28] sm:$0xff] %v177
  %334 = vst [vmem:[#allocation3 + $0x30] sm:$0xff] %v288
  %335 = vst [vmem:[#allocation3 + $0x38] sm:$0xff] %v290
  %336 = vst [vmem:[#allocation3 + $0x40] sm:$0xff] %v181
  %337 = vst [vmem:[#allocation3 + $0x48] sm:$0xff] %v183
  %338 = vst [vmem:[#allocation3 + $0x50] sm:$0xff] %v294
  %339 = vst [vmem:[#allocation3 + $0x58] sm:$0xff] %v296
  %340 = vst [vmem:[#allocation3 + $0x60] sm:$0xff] %v187
  %341 = vst [vmem:[#allocation3 + $0x68] sm:$0xff] %v189
  %342 = vst [vmem:[#allocation3 + $0x70] sm:$0xff] %v300
  %343 = vst [vmem:[#allocation3 + $0x78] sm:$0xff] %v302
  %344 = vst [vmem:[#allocation3 + $0x80] sm:$0xff] %v193
  %345 = vst [vmem:[#allocation3 + $0x88] sm:$0xff] %v195
  %346 = vst [vmem:[#allocation3 + $0x90] sm:$0xff] %v306
  %347 = vst [vmem:[#allocation3 + $0x98] sm:$0xff] %v308
  %348 = vst [vmem:[#allocation3 + $0xa0] sm:$0xff] %v199
  %349 = vst [vmem:[#allocation3 + $0xa8] sm:$0xff] %v201
  %350 = vst [vmem:[#allocation3 + $0xb0] sm:$0xff] %v312
  %351 = vst [vmem:[#allocation3 + $0xb8] sm:$0xff] %v314
  %352 = vst [vmem:[#allocation3 + $0xc0] sm:$0xff] %v205
  %353 = vst [vmem:[#allocation3 + $0xc8] sm:$0xff] %v207
  %354 = vst [vmem:[#allocation3 + $0xd0] sm:$0xff] %v318
  %355 = vst [vmem:[#allocation3 + $0xd8] sm:$0xff] %v320
  %356 = vst [vmem:[#allocation3 + $0xe0] sm:$0xff] %v211
  %357 = vst [vmem:[#allocation3 + $0xe8] sm:$0xff] %v213
  %358 = vst [vmem:[#allocation3 + $0xf0] sm:$0xff] %v324
  %359 = vst [vmem:[#allocation3 + $0xf8] sm:$0xff] %v326
  %v360 = vld [vmem:[#allocation3] sm:$0xff]
  %v361 = vld [vmem:[#allocation3 + $0x8] sm:$0xff]
  %v362 = vld [vmem:[#allocation3 + $0x10] sm:$0xff]
  %v363 = vld [vmem:[#allocation3 + $0x18] sm:$0xff]
  %v364 = vxor.u32 %v360, 2147483648
  %v365 = vxor.u32 %v361, 2147483648
  %v366 = vmul.f32 %v364, 1.442695
  %v367 = vpow.pop %v366
  %v368 = vmul.f32 %v365, 1.442695
  %v369 = vpow.pop %v368
  %v370 = vadd.f32 %v367, 1.0
  %v371 = vadd.f32 %v369, 1.0
  %v372 = vrcp.pop %v370
  %v373 = vmul.f32 1.0, %v372
  %v374 = vrcp.pop %v371
  %v375 = vmul.f32 1.0, %v374
  %v376 = vmul.f32 %v373, %v362
  %v377 = vadd.f32 %v363, %v376
  %v378 = vtanh.pop %v377
  %v379 = vsub.f32 1.0, %v375
  %v380 = vmul.f32 %v379, %v378
  %v381 = vmul.f32 %v375, 0.0
  %v382 = vadd.f32 %v380, %v381
  %vm383 = vcmask 523264
  %v384 = vsel %vm383, %v382, 0.0
  %s385 = smul.u32 1, 4
  %s386 = smul.addr %s385, 8
  %s387 = scalar_lea.vmem [#allocation3], %s386
  %v388 = vld [vmem:[%s387] sm:$0xff]
  %v389 = vld [vmem:[%s387 + $0x8] sm:$0xff]
  %v390 = vld [vmem:[%s387 + $0x10] sm:$0xff]
  %v391 = vld [vmem:[%s387 + $0x18] sm:$0xff]
  %v392 = vld [vmem:[%s3] sm:$0xff]
  %v393 = vld [vmem:[%s3 + $0x8] sm:$0xff]
  %v394 = vld [vmem:[%s3 + $0x10] sm:$0xff]
  %v395 = vld [vmem:[%s3 + $0x18] sm:$0xff]
  %v396 = vld [vmem:[%s3 + $0x20] sm:$0xff]
  %v397 = vld [vmem:[%s3 + $0x28] sm:$0xff]
  %v398 = vld [vmem:[%s3 + $0x30] sm:$0xff]
  %v399 = vld [vmem:[%s3 + $0x38] sm:$0xff]
  %v400 = vld [vmem:[%s3 + $0x40] sm:$0xff]
  %v401 = vld [vmem:[%s3 + $0x48] sm:$0xff]
  %v402 = vld [vmem:[%s3 + $0x50] sm:$0xff]
  %v403 = vld [vmem:[%s3 + $0x58] sm:$0xff]
  %v404 = vld [vmem:[%s3 + $0x60] sm:$0xff]
  %v405 = vld [vmem:[%s3 + $0x68] sm:$0xff]
  %v406 = vld [vmem:[%s3 + $0x70] sm:$0xff]
  %v407 = vld [vmem:[%s3 + $0x78] sm:$0xff]
  %v408 = vld [vmem:[%s3 + $0x80] sm:$0xff]
  %v409 = vld [vmem:[%s3 + $0x88] sm:$0xff]
  %v410 = vld [vmem:[%s3 + $0x90] sm:$0xff]
  %v411 = vld [vmem:[%s3 + $0x98] sm:$0xff]
  %v412 = vld [vmem:[%s3 + $0xa0] sm:$0xff]
  %v413 = vld [vmem:[%s3 + $0xa8] sm:$0xff]
  %v414 = vld [vmem:[%s3 + $0xb0] sm:$0xff]
  %v415 = vld [vmem:[%s3 + $0xb8] sm:$0xff]
  %v416 = vld [vmem:[%s3 + $0xc0] sm:$0xff]
  %v417 = vld [vmem:[%s3 + $0xc8] sm:$0xff]
  %v418 = vld [vmem:[%s3 + $0xd0] sm:$0xff]
  %v419 = vld [vmem:[%s3 + $0xd8] sm:$0xff]
  %v420 = vld [vmem:[%s3 + $0xe0] sm:$0xff]
  %v421 = vld [vmem:[%s3 + $0xe8] sm:$0xff]
  %v422 = vld [vmem:[%s3 + $0xf0] sm:$0xff]
  %v423 = vld [vmem:[%s3 + $0xf8] sm:$0xff]
  %v424 = vld [vmem:[%s3 + $0x100] sm:$0xff]
  %v425 = vld [vmem:[%s3 + $0x108] sm:$0xff]
  %v426 = vld [vmem:[%s3 + $0x110] sm:$0xff]
  %v427 = vld [vmem:[%s3 + $0x118] sm:$0xff]
  %v428 = vld [vmem:[%s3 + $0x120] sm:$0xff]
  %v429 = vld [vmem:[%s3 + $0x128] sm:$0xff]
  %v430 = vld [vmem:[%s3 + $0x130] sm:$0xff]
  %v431 = vld [vmem:[%s3 + $0x138] sm:$0xff]
  %v432 = vld [vmem:[%s3 + $0x140] sm:$0xff]
  %v433 = vld [vmem:[%s3 + $0x148] sm:$0xff]
  %v434 = vld [vmem:[%s3 + $0x150] sm:$0xff]
  %v435 = vld [vmem:[%s3 + $0x158] sm:$0xff]
  %v436 = vld [vmem:[%s3 + $0x160] sm:$0xff]
  %v437 = vld [vmem:[%s3 + $0x168] sm:$0xff]
  %v438 = vld [vmem:[%s3 + $0x170] sm:$0xff]
  %v439 = vld [vmem:[%s3 + $0x178] sm:$0xff]
  %v440 = vld [vmem:[%s3 + $0x180] sm:$0xff]
  %v441 = vld [vmem:[%s3 + $0x188] sm:$0xff]
  %v442 = vld [vmem:[%s3 + $0x190] sm:$0xff]
  %v443 = vld [vmem:[%s3 + $0x198] sm:$0xff]
  %v444 = vld [vmem:[%s3 + $0x1a0] sm:$0xff]
  %v445 = vld [vmem:[%s3 + $0x1a8] sm:$0xff]
  %v446 = vld [vmem:[%s3 + $0x1b0] sm:$0xff]
  %v447 = vld [vmem:[%s3 + $0x1b8] sm:$0xff]
  %v448 = vld [vmem:[%s3 + $0x1c0] sm:$0xff]
  %v449 = vld [vmem:[%s3 + $0x1c8] sm:$0xff]
  %v450 = vld [vmem:[%s3 + $0x1d0] sm:$0xff]
  %v451 = vld [vmem:[%s3 + $0x1d8] sm:$0xff]
  %v452 = vld [vmem:[%s3 + $0x1e0] sm:$0xff]
  %v453 = vld [vmem:[%s3 + $0x1e8] sm:$0xff]
  %v454 = vld [vmem:[%s3 + $0x1f0] sm:$0xff]
  %v455 = vld [vmem:[%s3 + $0x1f8] sm:$0xff]
  %456 = vmatprep.subr.mxu0 %v453
  %457 = vmatpush1.msra.mxu0 %v452
  %458 = vmatprep.subr.mxu0 %v449
  %459 = vmatpush1.msra.mxu0 %v448
  %460 = vmatprep.subr.mxu0 %v445
  %461 = vmatpush1.msra.mxu0 %v444
  %462 = vmatprep.subr.mxu0 %v441
  %463 = vmatpush1.msra.mxu0 %v440
  %464 = vmatprep.subr.mxu0 %v437
  %465 = vmatpush1.msra.mxu0 %v436
  %466 = vmatprep.subr.mxu0 %v433
  %467 = vmatpush1.msra.mxu0 %v432
  %468 = vmatprep.subr.mxu0 %v429
  %469 = vmatpush1.msra.mxu0 %v428
  %470 = vmatprep.subr.mxu0 %v425
  %471 = vmatpush1.msra.mxu0 %v424
  %472 = vmatprep.subr.mxu0 %v421
  %473 = vmatpush1.msra.mxu0 %v420
  %474 = vmatprep.subr.mxu0 %v417
  %475 = vmatpush1.msra.mxu0 %v416
  %476 = vmatprep.subr.mxu0 %v413
  %477 = vmatpush1.msra.mxu0 %v412
  %478 = vmatprep.subr.mxu0 %v409
  %479 = vmatpush1.msra.mxu0 %v408
  %480 = vmatprep.subr.mxu0 %v405
  %481 = vmatpush1.msra.mxu0 %v404
  %482 = vmatprep.subr.mxu0 %v401
  %483 = vmatpush1.msra.mxu0 %v400
  %484 = vmatprep.subr.mxu0 %v397
  %485 = vmatpush1.msra.mxu0 %v396
  %486 = vmatprep.subr.mxu0 %v393
  %487 = vmatpush1.msra.mxu0 %v392
  %488 = vmatprep.subr.mxu0 0.0
  %489 = vmatpush2.msra.mxu0 0.0
  %490 = vmatprep.subr.mxu0 0.0
  %491 = vmatpush2.msra.mxu0 0.0
  %492 = vmatprep.subr.mxu0 0.0
  %493 = vmatpush2.msra.mxu0 0.0
  %494 = vmatprep.subr.mxu0 0.0
  %495 = vmatpush2.msra.mxu0 0.0
  %496 = vmatprep.subr.mxu0 0.0
  %497 = vmatpush2.msra.mxu0 0.0
  %498 = vmatprep.subr.mxu0 0.0
  %499 = vmatpush2.msra.mxu0 0.0
  %500 = vmatprep.subr.mxu0 0.0
  %501 = vmatpush2.msra.mxu0 0.0
  %502 = vmatprep.subr.mxu0 0.0
  %503 = vmatpush2.msra.mxu0 0.0
  %504 = vmatprep.subr.mxu0 0.0
  %505 = vmatpush2.msra.mxu0 0.0
  %506 = vmatprep.subr.mxu0 0.0
  %507 = vmatpush2.msra.mxu0 0.0
  %508 = vmatprep.subr.mxu0 0.0
  %509 = vmatpush2.msra.mxu0 0.0
  %510 = vmatprep.subr.mxu0 0.0
  %511 = vmatpush2.msra.mxu0 0.0
  %512 = vmatprep.subr.mxu0 0.0
  %513 = vmatpush2.msra.mxu0 0.0
  %514 = vmatprep.subr.mxu0 0.0
  %515 = vmatpush2.msra.mxu0 0.0
  %516 = vmatprep.subr.mxu0 0.0
  %517 = vmatpush2.msra.mxu0 0.0
  %518 = vmatprep.subr.mxu0 0.0
  %519 = vmatpush2.msra.mxu0 0.0
  %520 = vmatprep.mubr.f32.mxu0 0.0
  %521 = vmatmul.mubr.f32.gmra.mxu0 %v384
  %v522 = vpop.f32.mrf.mxu0
  %v523 = vadd.f32 0.0, %v522
  %v524 = vpop.f32.mrf.mxu0
  %v525 = vadd.f32 0.0, %v524
  %526 = vdwg.mxu0
  %527 = vmatprep.subr.mxu0 %v455
  %528 = vmatpush1.msra.mxu0 %v454
  %529 = vmatprep.subr.mxu0 %v451
  %530 = vmatpush1.msra.mxu0 %v450
  %531 = vmatprep.subr.mxu0 %v447
  %532 = vmatpush1.msra.mxu0 %v446
  %533 = vmatprep.subr.mxu0 %v443
  %534 = vmatpush1.msra.mxu0 %v442
  %535 = vmatprep.subr.mxu0 %v439
  %536 = vmatpush1.msra.mxu0 %v438
  %537 = vmatprep.subr.mxu0 %v435
  %538 = vmatpush1.msra.mxu0 %v434
  %539 = vmatprep.subr.mxu0 %v431
  %540 = vmatpush1.msra.mxu0 %v430
  %541 = vmatprep.subr.mxu0 %v427
  %542 = vmatpush1.msra.mxu0 %v426
  %543 = vmatprep.subr.mxu0 %v423
  %544 = vmatpush1.msra.mxu0 %v422
  %545 = vmatprep.subr.mxu0 %v419
  %546 = vmatpush1.msra.mxu0 %v418
  %547 = vmatprep.subr.mxu0 %v415
  %548 = vmatpush1.msra.mxu0 %v414
  %549 = vmatprep.subr.mxu0 %v411
  %550 = vmatpush1.msra.mxu0 %v410
  %551 = vmatprep.subr.mxu0 %v407
  %552 = vmatpush1.msra.mxu0 %v406
  %553 = vmatprep.subr.mxu0 %v403
  %554 = vmatpush1.msra.mxu0 %v402
  %555 = vmatprep.subr.mxu0 %v399
  %556 = vmatpush1.msra.mxu0 %v398
  %557 = vmatprep.subr.mxu0 %v395
  %558 = vmatpush1.msra.mxu0 %v394
  %559 = vmatprep.subr.mxu0 0.0
  %560 = vmatpush2.msra.mxu0 0.0
  %561 = vmatprep.subr.mxu0 0.0
  %562 = vmatpush2.msra.mxu0 0.0
  %563 = vmatprep.subr.mxu0 0.0
  %564 = vmatpush2.msra.mxu0 0.0
  %565 = vmatprep.subr.mxu0 0.0
  %566 = vmatpush2.msra.mxu0 0.0
  %567 = vmatprep.subr.mxu0 0.0
  %568 = vmatpush2.msra.mxu0 0.0
  %569 = vmatprep.subr.mxu0 0.0
  %570 = vmatpush2.msra.mxu0 0.0
  %571 = vmatprep.subr.mxu0 0.0
  %572 = vmatpush2.msra.mxu0 0.0
  %573 = vmatprep.subr.mxu0 0.0
  %574 = vmatpush2.msra.mxu0 0.0
  %575 = vmatprep.subr.mxu0 0.0
  %576 = vmatpush2.msra.mxu0 0.0
  %577 = vmatprep.subr.mxu0 0.0
  %578 = vmatpush2.msra.mxu0 0.0
  %579 = vmatprep.subr.mxu0 0.0
  %580 = vmatpush2.msra.mxu0 0.0
  %581 = vmatprep.subr.mxu0 0.0
  %582 = vmatpush2.msra.mxu0 0.0
  %583 = vmatprep.subr.mxu0 0.0
  %584 = vmatpush2.msra.mxu0 0.0
  %585 = vmatprep.subr.mxu0 0.0
  %586 = vmatpush2.msra.mxu0 0.0
  %587 = vmatprep.subr.mxu0 0.0
  %588 = vmatpush2.msra.mxu0 0.0
  %589 = vmatprep.subr.mxu0 0.0
  %590 = vmatpush2.msra.mxu0 0.0
  %591 = vmatprep.mubr.f32.mxu0 0.0
  %592 = vmatmul.mubr.f32.gmra.mxu0 %v384
  %v593 = vpop.f32.mrf.mxu0
  %v594 = vadd.f32 0.0, %v593
  %v595 = vpop.f32.mrf.mxu0
  %v596 = vadd.f32 0.0, %v595
  %597 = vdwg.mxu0
  %v598 = vadd.f32 %v388, %v523
  %v599 = vadd.f32 %v389, %v525
  %v600 = vadd.f32 %v390, %v594
  %v601 = vadd.f32 %v391, %v596
  %v602 = vxor.u32 %v598, 2147483648
  %v603 = vxor.u32 %v599, 2147483648
  %v604 = vmul.f32 %v602, 1.442695
  %v605 = vpow.pop %v604
  %v606 = vmul.f32 %v603, 1.442695
  %v607 = vpow.pop %v606
  %v608 = vadd.f32 %v605, 1.0
  %v609 = vadd.f32 %v607, 1.0
  %v610 = vrcp.pop %v608
  %v611 = vmul.f32 1.0, %v610
  %v612 = vrcp.pop %v609
  %v613 = vmul.f32 1.0, %v612
  %v614 = vmul.f32 %v611, %v600
  %v615 = vadd.f32 %v601, %v614
  %v616 = vtanh.pop %v615
  %v617 = vsub.f32 1.0, %v613
  %v618 = vmul.f32 %v617, %v616
  %v619 = vmul.f32 %v613, %v384
  %v620 = vadd.f32 %v618, %v619
  %s621 = smul.u32 2, 4
  %s622 = smul.addr %s621, 8
  %s623 = scalar_lea.vmem [#allocation3], %s622
  %v624 = vld [vmem:[%s623] sm:$0xff]
  %v625 = vld [vmem:[%s623 + $0x8] sm:$0xff]
  %v626 = vld [vmem:[%s623 + $0x10] sm:$0xff]
  %v627 = vld [vmem:[%s623 + $0x18] sm:$0xff]
  %628 = vmatprep.subr.mxu0 %v453
  %629 = vmatpush1.msra.mxu0 %v452
  %630 = vmatprep.subr.mxu0 %v449
  %631 = vmatpush1.msra.mxu0 %v448
  %632 = vmatprep.subr.mxu0 %v445
  %633 = vmatpush1.msra.mxu0 %v444
  %634 = vmatprep.subr.mxu0 %v441
  %635 = vmatpush1.msra.mxu0 %v440
  %636 = vmatprep.subr.mxu0 %v437
  %637 = vmatpush1.msra.mxu0 %v436
  %638 = vmatprep.subr.mxu0 %v433
  %639 = vmatpush1.msra.mxu0 %v432
  %640 = vmatprep.subr.mxu0 %v429
  %641 = vmatpush1.msra.mxu0 %v428
  %642 = vmatprep.subr.mxu0 %v425
  %643 = vmatpush1.msra.mxu0 %v424
  %644 = vmatprep.subr.mxu0 %v421
  %645 = vmatpush1.msra.mxu0 %v420
  %646 = vmatprep.subr.mxu0 %v417
  %647 = vmatpush1.msra.mxu0 %v416
  %648 = vmatprep.subr.mxu0 %v413
  %649 = vmatpush1.msra.mxu0 %v412
  %650 = vmatprep.subr.mxu0 %v409
  %651 = vmatpush1.msra.mxu0 %v408
  %652 = vmatprep.subr.mxu0 %v405
  %653 = vmatpush1.msra.mxu0 %v404
  %654 = vmatprep.subr.mxu0 %v401
  %655 = vmatpush1.msra.mxu0 %v400
  %656 = vmatprep.subr.mxu0 %v397
  %657 = vmatpush1.msra.mxu0 %v396
  %658 = vmatprep.subr.mxu0 %v393
  %659 = vmatpush1.msra.mxu0 %v392
  %660 = vmatprep.subr.mxu0 0.0
  %661 = vmatpush2.msra.mxu0 0.0
  %662 = vmatprep.subr.mxu0 0.0
  %663 = vmatpush2.msra.mxu0 0.0
  %664 = vmatprep.subr.mxu0 0.0
  %665 = vmatpush2.msra.mxu0 0.0
  %666 = vmatprep.subr.mxu0 0.0
  %667 = vmatpush2.msra.mxu0 0.0
  %668 = vmatprep.subr.mxu0 0.0
  %669 = vmatpush2.msra.mxu0 0.0
  %670 = vmatprep.subr.mxu0 0.0
  %671 = vmatpush2.msra.mxu0 0.0
  %672 = vmatprep.subr.mxu0 0.0
  %673 = vmatpush2.msra.mxu0 0.0
  %674 = vmatprep.subr.mxu0 0.0
  %675 = vmatpush2.msra.mxu0 0.0
  %676 = vmatprep.subr.mxu0 0.0
  %677 = vmatpush2.msra.mxu0 0.0
  %678 = vmatprep.subr.mxu0 0.0
  %679 = vmatpush2.msra.mxu0 0.0
  %680 = vmatprep.subr.mxu0 0.0
  %681 = vmatpush2.msra.mxu0 0.0
  %682 = vmatprep.subr.mxu0 0.0
  %683 = vmatpush2.msra.mxu0 0.0
  %684 = vmatprep.subr.mxu0 0.0
  %685 = vmatpush2.msra.mxu0 0.0
  %686 = vmatprep.subr.mxu0 0.0
  %687 = vmatpush2.msra.mxu0 0.0
  %688 = vmatprep.subr.mxu0 0.0
  %689 = vmatpush2.msra.mxu0 0.0
  %690 = vmatprep.subr.mxu0 0.0
  %691 = vmatpush2.msra.mxu0 0.0
  %692 = vmatprep.mubr.f32.mxu0 0.0
  %693 = vmatmul.mubr.f32.gmra.mxu0 %v620
  %v694 = vpop.f32.mrf.mxu0
  %v695 = vadd.f32 0.0, %v694
  %v696 = vpop.f32.mrf.mxu0
  %v697 = vadd.f32 0.0, %v696
  %698 = vdwg.mxu0
  %699 = vmatprep.subr.mxu0 %v455
  %700 = vmatpush1.msra.mxu0 %v454
  %701 = vmatprep.subr.mxu0 %v451
  %702 = vmatpush1.msra.mxu0 %v450
  %703 = vmatprep.subr.mxu0 %v447
  %704 = vmatpush1.msra.mxu0 %v446
  %705 = vmatprep.subr.mxu0 %v443
  %706 = vmatpush1.msra.mxu0 %v442
  %707 = vmatprep.subr.mxu0 %v439
  %708 = vmatpush1.msra.mxu0 %v438
  %709 = vmatprep.subr.mxu0 %v435
  %710 = vmatpush1.msra.mxu0 %v434
  %711 = vmatprep.subr.mxu0 %v431
  %712 = vmatpush1.msra.mxu0 %v430
  %713 = vmatprep.subr.mxu0 %v427
  %714 = vmatpush1.msra.mxu0 %v426
  %715 = vmatprep.subr.mxu0 %v423
  %716 = vmatpush1.msra.mxu0 %v422
  %717 = vmatprep.subr.mxu0 %v419
  %718 = vmatpush1.msra.mxu0 %v418
  %719 = vmatprep.subr.mxu0 %v415
  %720 = vmatpush1.msra.mxu0 %v414
  %721 = vmatprep.subr.mxu0 %v411
  %722 = vmatpush1.msra.mxu0 %v410
  %723 = vmatprep.subr.mxu0 %v407
  %724 = vmatpush1.msra.mxu0 %v406
  %725 = vmatprep.subr.mxu0 %v403
  %726 = vmatpush1.msra.mxu0 %v402
  %727 = vmatprep.subr.mxu0 %v399
  %728 = vmatpush1.msra.mxu0 %v398
  %729 = vmatprep.subr.mxu0 %v395
  %730 = vmatpush1.msra.mxu0 %v394
  %731 = vmatprep.subr.mxu0 0.0
  %732 = vmatpush2.msra.mxu0 0.0
  %733 = vmatprep.subr.mxu0 0.0
  %734 = vmatpush2.msra.mxu0 0.0
  %735 = vmatprep.subr.mxu0 0.0
  %736 = vmatpush2.msra.mxu0 0.0
  %737 = vmatprep.subr.mxu0 0.0
  %738 = vmatpush2.msra.mxu0 0.0
  %739 = vmatprep.subr.mxu0 0.0
  %740 = vmatpush2.msra.mxu0 0.0
  %741 = vmatprep.subr.mxu0 0.0
  %742 = vmatpush2.msra.mxu0 0.0
  %743 = vmatprep.subr.mxu0 0.0
  %744 = vmatpush2.msra.mxu0 0.0
  %745 = vmatprep.subr.mxu0 0.0
  %746 = vmatpush2.msra.mxu0 0.0
  %747 = vmatprep.subr.mxu0 0.0
  %748 = vmatpush2.msra.mxu0 0.0
  %749 = vmatprep.subr.mxu0 0.0
  %750 = vmatpush2.msra.mxu0 0.0
  %751 = vmatprep.subr.mxu0 0.0
  %752 = vmatpush2.msra.mxu0 0.0
  %753 = vmatprep.subr.mxu0 0.0
  %754 = vmatpush2.msra.mxu0 0.0
  %755 = vmatprep.subr.mxu0 0.0
  %756 = vmatpush2.msra.mxu0 0.0
  %757 = vmatprep.subr.mxu0 0.0
  %758 = vmatpush2.msra.mxu0 0.0
  %759 = vmatprep.subr.mxu0 0.0
  %760 = vmatpush2.msra.mxu0 0.0
  %761 = vmatprep.subr.mxu0 0.0
  %762 = vmatpush2.msra.mxu0 0.0
  %763 = vmatprep.mubr.f32.mxu0 0.0
  %764 = vmatmul.mubr.f32.gmra.mxu0 %v620
  %v765 = vpop.f32.mrf.mxu0
  %v766 = vadd.f32 0.0, %v765
  %v767 = vpop.f32.mrf.mxu0
  %v768 = vadd.f32 0.0, %v767
  %769 = vdwg.mxu0
  %v770 = vadd.f32 %v624, %v695
  %v771 = vadd.f32 %v625, %v697
  %v772 = vadd.f32 %v626, %v766
  %v773 = vadd.f32 %v627, %v768
  %v774 = vxor.u32 %v770, 2147483648
  %v775 = vxor.u32 %v771, 2147483648
  %v776 = vmul.f32 %v774, 1.442695
  %v777 = vpow.pop %v776
  %v778 = vmul.f32 %v775, 1.442695
  %v779 = vpow.pop %v778
  %v780 = vadd.f32 %v777, 1.0
  %v781 = vadd.f32 %v779, 1.0
  %v782 = vrcp.pop %v780
  %v783 = vmul.f32 1.0, %v782
  %v784 = vrcp.pop %v781
  %v785 = vmul.f32 1.0, %v784
  %v786 = vmul.f32 %v783, %v772
  %v787 = vadd.f32 %v773, %v786
  %v788 = vtanh.pop %v787
  %v789 = vsub.f32 1.0, %v785
  %v790 = vmul.f32 %v789, %v788
  %v791 = vmul.f32 %v785, %v620
  %v792 = vadd.f32 %v790, %v791
  %s793 = smul.u32 3, 4
  %s794 = smul.addr %s793, 8
  %s795 = scalar_lea.vmem [#allocation3], %s794
  %v796 = vld [vmem:[%s795] sm:$0xff]
  %v797 = vld [vmem:[%s795 + $0x8] sm:$0xff]
  %v798 = vld [vmem:[%s795 + $0x10] sm:$0xff]
  %v799 = vld [vmem:[%s795 + $0x18] sm:$0xff]
  %800 = vmatprep.subr.mxu0 %v453
  %801 = vmatpush1.msra.mxu0 %v452
  %802 = vmatprep.subr.mxu0 %v449
  %803 = vmatpush1.msra.mxu0 %v448
  %804 = vmatprep.subr.mxu0 %v445
  %805 = vmatpush1.msra.mxu0 %v444
  %806 = vmatprep.subr.mxu0 %v441
  %807 = vmatpush1.msra.mxu0 %v440
  %808 = vmatprep.subr.mxu0 %v437
  %809 = vmatpush1.msra.mxu0 %v436
  %810 = vmatprep.subr.mxu0 %v433
  %811 = vmatpush1.msra.mxu0 %v432
  %812 = vmatprep.subr.mxu0 %v429
  %813 = vmatpush1.msra.mxu0 %v428
  %814 = vmatprep.subr.mxu0 %v425
  %815 = vmatpush1.msra.mxu0 %v424
  %816 = vmatprep.subr.mxu0 %v421
  %817 = vmatpush1.msra.mxu0 %v420
  %818 = vmatprep.subr.mxu0 %v417
  %819 = vmatpush1.msra.mxu0 %v416
  %820 = vmatprep.subr.mxu0 %v413
  %821 = vmatpush1.msra.mxu0 %v412
  %822 = vmatprep.subr.mxu0 %v409
  %823 = vmatpush1.msra.mxu0 %v408
  %824 = vmatprep.subr.mxu0 %v405
  %825 = vmatpush1.msra.mxu0 %v404
  %826 = vmatprep.subr.mxu0 %v401
  %827 = vmatpush1.msra.mxu0 %v400
  %828 = vmatprep.subr.mxu0 %v397
  %829 = vmatpush1.msra.mxu0 %v396
  %830 = vmatprep.subr.mxu0 %v393
  %831 = vmatpush1.msra.mxu0 %v392
  %832 = vmatprep.subr.mxu0 0.0
  %833 = vmatpush2.msra.mxu0 0.0
  %834 = vmatprep.subr.mxu0 0.0
  %835 = vmatpush2.msra.mxu0 0.0
  %836 = vmatprep.subr.mxu0 0.0
  %837 = vmatpush2.msra.mxu0 0.0
  %838 = vmatprep.subr.mxu0 0.0
  %839 = vmatpush2.msra.mxu0 0.0
  %840 = vmatprep.subr.mxu0 0.0
  %841 = vmatpush2.msra.mxu0 0.0
  %842 = vmatprep.subr.mxu0 0.0
  %843 = vmatpush2.msra.mxu0 0.0
  %844 = vmatprep.subr.mxu0 0.0
  %845 = vmatpush2.msra.mxu0 0.0
  %846 = vmatprep.subr.mxu0 0.0
  %847 = vmatpush2.msra.mxu0 0.0
  %848 = vmatprep.subr.mxu0 0.0
  %849 = vmatpush2.msra.mxu0 0.0
  %850 = vmatprep.subr.mxu0 0.0
  %851 = vmatpush2.msra.mxu0 0.0
  %852 = vmatprep.subr.mxu0 0.0
  %853 = vmatpush2.msra.mxu0 0.0
  %854 = vmatprep.subr.mxu0 0.0
  %855 = vmatpush2.msra.mxu0 0.0
  %856 = vmatprep.subr.mxu0 0.0
  %857 = vmatpush2.msra.mxu0 0.0
  %858 = vmatprep.subr.mxu0 0.0
  %859 = vmatpush2.msra.mxu0 0.0
  %860 = vmatprep.subr.mxu0 0.0
  %861 = vmatpush2.msra.mxu0 0.0
  %862 = vmatprep.subr.mxu0 0.0
  %863 = vmatpush2.msra.mxu0 0.0
  %864 = vmatprep.mubr.f32.mxu0 0.0
  %865 = vmatmul.mubr.f32.gmra.mxu0 %v792
  %v866 = vpop.f32.mrf.mxu0
  %v867 = vadd.f32 0.0, %v866
  %v868 = vpop.f32.mrf.mxu0
  %v869 = vadd.f32 0.0, %v868
  %870 = vdwg.mxu0
  %871 = vmatprep.subr.mxu0 %v455
  %872 = vmatpush1.msra.mxu0 %v454
  %873 = vmatprep.subr.mxu0 %v451
  %874 = vmatpush1.msra.mxu0 %v450
  %875 = vmatprep.subr.mxu0 %v447
  %876 = vmatpush1.msra.mxu0 %v446
  %877 = vmatprep.subr.mxu0 %v443
  %878 = vmatpush1.msra.mxu0 %v442
  %879 = vmatprep.subr.mxu0 %v439
  %880 = vmatpush1.msra.mxu0 %v438
  %881 = vmatprep.subr.mxu0 %v435
  %882 = vmatpush1.msra.mxu0 %v434
  %883 = vmatprep.subr.mxu0 %v431
  %884 = vmatpush1.msra.mxu0 %v430
  %885 = vmatprep.subr.mxu0 %v427
  %886 = vmatpush1.msra.mxu0 %v426
  %887 = vmatprep.subr.mxu0 %v423
  %888 = vmatpush1.msra.mxu0 %v422
  %889 = vmatprep.subr.mxu0 %v419
  %890 = vmatpush1.msra.mxu0 %v418
  %891 = vmatprep.subr.mxu0 %v415
  %892 = vmatpush1.msra.mxu0 %v414
  %893 = vmatprep.subr.mxu0 %v411
  %894 = vmatpush1.msra.mxu0 %v410
  %895 = vmatprep.subr.mxu0 %v407
  %896 = vmatpush1.msra.mxu0 %v406
  %897 = vmatprep.subr.mxu0 %v403
  %898 = vmatpush1.msra.mxu0 %v402
  %899 = vmatprep.subr.mxu0 %v399
  %900 = vmatpush1.msra.mxu0 %v398
  %901 = vmatprep.subr.mxu0 %v395
  %902 = vmatpush1.msra.mxu0 %v394
  %903 = vmatprep.subr.mxu0 0.0
  %904 = vmatpush2.msra.mxu0 0.0
  %905 = vmatprep.subr.mxu0 0.0
  %906 = vmatpush2.msra.mxu0 0.0
  %907 = vmatprep.subr.mxu0 0.0
  %908 = vmatpush2.msra.mxu0 0.0
  %909 = vmatprep.subr.mxu0 0.0
  %910 = vmatpush2.msra.mxu0 0.0
  %911 = vmatprep.subr.mxu0 0.0
  %912 = vmatpush2.msra.mxu0 0.0
  %913 = vmatprep.subr.mxu0 0.0
  %914 = vmatpush2.msra.mxu0 0.0
  %915 = vmatprep.subr.mxu0 0.0
  %916 = vmatpush2.msra.mxu0 0.0
  %917 = vmatprep.subr.mxu0 0.0
  %918 = vmatpush2.msra.mxu0 0.0
  %919 = vmatprep.subr.mxu0 0.0
  %920 = vmatpush2.msra.mxu0 0.0
  %921 = vmatprep.subr.mxu0 0.0
  %922 = vmatpush2.msra.mxu0 0.0
  %923 = vmatprep.subr.mxu0 0.0
  %924 = vmatpush2.msra.mxu0 0.0
  %925 = vmatprep.subr.mxu0 0.0
  %926 = vmatpush2.msra.mxu0 0.0
  %927 = vmatprep.subr.mxu0 0.0
  %928 = vmatpush2.msra.mxu0 0.0
  %929 = vmatprep.subr.mxu0 0.0
  %930 = vmatpush2.msra.mxu0 0.0
  %931 = vmatprep.subr.mxu0 0.0
  %932 = vmatpush2.msra.mxu0 0.0
  %933 = vmatprep.subr.mxu0 0.0
  %934 = vmatpush2.msra.mxu0 0.0
  %935 = vmatprep.mubr.f32.mxu0 0.0
  %936 = vmatmul.mubr.f32.gmra.mxu0 %v792
  %v937 = vpop.f32.mrf.mxu0
  %v938 = vadd.f32 0.0, %v937
  %v939 = vpop.f32.mrf.mxu0
  %v940 = vadd.f32 0.0, %v939
  %941 = vdwg.mxu0
  %v942 = vadd.f32 %v796, %v867
  %v943 = vadd.f32 %v797, %v869
  %v944 = vadd.f32 %v798, %v938
  %v945 = vadd.f32 %v799, %v940
  %v946 = vxor.u32 %v942, 2147483648
  %v947 = vxor.u32 %v943, 2147483648
  %v948 = vmul.f32 %v946, 1.442695
  %v949 = vpow.pop %v948
  %v950 = vmul.f32 %v947, 1.442695
  %v951 = vpow.pop %v950
  %v952 = vadd.f32 %v949, 1.0
  %v953 = vadd.f32 %v951, 1.0
  %v954 = vrcp.pop %v952
  %v955 = vmul.f32 1.0, %v954
  %v956 = vrcp.pop %v953
  %v957 = vmul.f32 1.0, %v956
  %v958 = vmul.f32 %v955, %v944
  %v959 = vadd.f32 %v945, %v958
  %v960 = vtanh.pop %v959
  %v961 = vsub.f32 1.0, %v957
  %v962 = vmul.f32 %v961, %v960
  %v963 = vmul.f32 %v957, %v792
  %v964 = vadd.f32 %v962, %v963
  %s965 = smul.u32 4, 4
  %s966 = smul.addr %s965, 8
  %s967 = scalar_lea.vmem [#allocation3], %s966
  %v968 = vld [vmem:[%s967] sm:$0xff]
  %v969 = vld [vmem:[%s967 + $0x8] sm:$0xff]
  %v970 = vld [vmem:[%s967 + $0x10] sm:$0xff]
  %v971 = vld [vmem:[%s967 + $0x18] sm:$0xff]
  %972 = vmatprep.subr.mxu0 %v453
  %973 = vmatpush1.msra.mxu0 %v452
  %974 = vmatprep.subr.mxu0 %v449
  %975 = vmatpush1.msra.mxu0 %v448
  %976 = vmatprep.subr.mxu0 %v445
  %977 = vmatpush1.msra.mxu0 %v444
  %978 = vmatprep.subr.mxu0 %v441
  %979 = vmatpush1.msra.mxu0 %v440
  %980 = vmatprep.subr.mxu0 %v437
  %981 = vmatpush1.msra.mxu0 %v436
  %982 = vmatprep.subr.mxu0 %v433
  %983 = vmatpush1.msra.mxu0 %v432
  %984 = vmatprep.subr.mxu0 %v429
  %985 = vmatpush1.msra.mxu0 %v428
  %986 = vmatprep.subr.mxu0 %v425
  %987 = vmatpush1.msra.mxu0 %v424
  %988 = vmatprep.subr.mxu0 %v421
  %989 = vmatpush1.msra.mxu0 %v420
  %990 = vmatprep.subr.mxu0 %v417
  %991 = vmatpush1.msra.mxu0 %v416
  %992 = vmatprep.subr.mxu0 %v413
  %993 = vmatpush1.msra.mxu0 %v412
  %994 = vmatprep.subr.mxu0 %v409
  %995 = vmatpush1.msra.mxu0 %v408
  %996 = vmatprep.subr.mxu0 %v405
  %997 = vmatpush1.msra.mxu0 %v404
  %998 = vmatprep.subr.mxu0 %v401
  %999 = vmatpush1.msra.mxu0 %v400
  %1000 = vmatprep.subr.mxu0 %v397
  %1001 = vmatpush1.msra.mxu0 %v396
  %1002 = vmatprep.subr.mxu0 %v393
  %1003 = vmatpush1.msra.mxu0 %v392
  %1004 = vmatprep.subr.mxu0 0.0
  %1005 = vmatpush2.msra.mxu0 0.0
  %1006 = vmatprep.subr.mxu0 0.0
  %1007 = vmatpush2.msra.mxu0 0.0
  %1008 = vmatprep.subr.mxu0 0.0
  %1009 = vmatpush2.msra.mxu0 0.0
  %1010 = vmatprep.subr.mxu0 0.0
  %1011 = vmatpush2.msra.mxu0 0.0
  %1012 = vmatprep.subr.mxu0 0.0
  %1013 = vmatpush2.msra.mxu0 0.0
  %1014 = vmatprep.subr.mxu0 0.0
  %1015 = vmatpush2.msra.mxu0 0.0
  %1016 = vmatprep.subr.mxu0 0.0
  %1017 = vmatpush2.msra.mxu0 0.0
  %1018 = vmatprep.subr.mxu0 0.0
  %1019 = vmatpush2.msra.mxu0 0.0
  %1020 = vmatprep.subr.mxu0 0.0
  %1021 = vmatpush2.msra.mxu0 0.0
  %1022 = vmatprep.subr.mxu0 0.0
  %1023 = vmatpush2.msra.mxu0 0.0
  %1024 = vmatprep.subr.mxu0 0.0
  %1025 = vmatpush2.msra.mxu0 0.0
  %1026 = vmatprep.subr.mxu0 0.0
  %1027 = vmatpush2.msra.mxu0 0.0
  %1028 = vmatprep.subr.mxu0 0.0
  %1029 = vmatpush2.msra.mxu0 0.0
  %1030 = vmatprep.subr.mxu0 0.0
  %1031 = vmatpush2.msra.mxu0 0.0
  %1032 = vmatprep.subr.mxu0 0.0
  %1033 = vmatpush2.msra.mxu0 0.0
  %1034 = vmatprep.subr.mxu0 0.0
  %1035 = vmatpush2.msra.mxu0 0.0
  %1036 = vmatprep.mubr.f32.mxu0 0.0
  %1037 = vmatmul.mubr.f32.gmra.mxu0 %v964
  %v1038 = vpop.f32.mrf.mxu0
  %v1039 = vadd.f32 0.0, %v1038
  %v1040 = vpop.f32.mrf.mxu0
  %v1041 = vadd.f32 0.0, %v1040
  %1042 = vdwg.mxu0
  %1043 = vmatprep.subr.mxu0 %v455
  %1044 = vmatpush1.msra.mxu0 %v454
  %1045 = vmatprep.subr.mxu0 %v451
  %1046 = vmatpush1.msra.mxu0 %v450
  %1047 = vmatprep.subr.mxu0 %v447
  %1048 = vmatpush1.msra.mxu0 %v446
  %1049 = vmatprep.subr.mxu0 %v443
  %1050 = vmatpush1.msra.mxu0 %v442
  %1051 = vmatprep.subr.mxu0 %v439
  %1052 = vmatpush1.msra.mxu0 %v438
  %1053 = vmatprep.subr.mxu0 %v435
  %1054 = vmatpush1.msra.mxu0 %v434
  %1055 = vmatprep.subr.mxu0 %v431
  %1056 = vmatpush1.msra.mxu0 %v430
  %1057 = vmatprep.subr.mxu0 %v427
  %1058 = vmatpush1.msra.mxu0 %v426
  %1059 = vmatprep.subr.mxu0 %v423
  %1060 = vmatpush1.msra.mxu0 %v422
  %1061 = vmatprep.subr.mxu0 %v419
  %1062 = vmatpush1.msra.mxu0 %v418
  %1063 = vmatprep.subr.mxu0 %v415
  %1064 = vmatpush1.msra.mxu0 %v414
  %1065 = vmatprep.subr.mxu0 %v411
  %1066 = vmatpush1.msra.mxu0 %v410
  %1067 = vmatprep.subr.mxu0 %v407
  %1068 = vmatpush1.msra.mxu0 %v406
  %1069 = vmatprep.subr.mxu0 %v403
  %1070 = vmatpush1.msra.mxu0 %v402
  %1071 = vmatprep.subr.mxu0 %v399
  %1072 = vmatpush1.msra.mxu0 %v398
  %1073 = vmatprep.subr.mxu0 %v395
  %1074 = vmatpush1.msra.mxu0 %v394
  %1075 = vmatprep.subr.mxu0 0.0
  %1076 = vmatpush2.msra.mxu0 0.0
  %1077 = vmatprep.subr.mxu0 0.0
  %1078 = vmatpush2.msra.mxu0 0.0
  %1079 = vmatprep.subr.mxu0 0.0
  %1080 = vmatpush2.msra.mxu0 0.0
  %1081 = vmatprep.subr.mxu0 0.0
  %1082 = vmatpush2.msra.mxu0 0.0
  %1083 = vmatprep.subr.mxu0 0.0
  %1084 = vmatpush2.msra.mxu0 0.0
  %1085 = vmatprep.subr.mxu0 0.0
  %1086 = vmatpush2.msra.mxu0 0.0
  %1087 = vmatprep.subr.mxu0 0.0
  %1088 = vmatpush2.msra.mxu0 0.0
  %1089 = vmatprep.subr.mxu0 0.0
  %1090 = vmatpush2.msra.mxu0 0.0
  %1091 = vmatprep.subr.mxu0 0.0
  %1092 = vmatpush2.msra.mxu0 0.0
  %1093 = vmatprep.subr.mxu0 0.0
  %1094 = vmatpush2.msra.mxu0 0.0
  %1095 = vmatprep.subr.mxu0 0.0
  %1096 = vmatpush2.msra.mxu0 0.0
  %1097 = vmatprep.subr.mxu0 0.0
  %1098 = vmatpush2.msra.mxu0 0.0
  %1099 = vmatprep.subr.mxu0 0.0
  %1100 = vmatpush2.msra.mxu0 0.0
  %1101 = vmatprep.subr.mxu0 0.0
  %1102 = vmatpush2.msra.mxu0 0.0
  %1103 = vmatprep.subr.mxu0 0.0
  %1104 = vmatpush2.msra.mxu0 0.0
  %1105 = vmatprep.subr.mxu0 0.0
  %1106 = vmatpush2.msra.mxu0 0.0
  %1107 = vmatprep.mubr.f32.mxu0 0.0
  %1108 = vmatmul.mubr.f32.gmra.mxu0 %v964
  %v1109 = vpop.f32.mrf.mxu0
  %v1110 = vadd.f32 0.0, %v1109
  %v1111 = vpop.f32.mrf.mxu0
  %v1112 = vadd.f32 0.0, %v1111
  %1113 = vdwg.mxu0
  %v1114 = vadd.f32 %v968, %v1039
  %v1115 = vadd.f32 %v969, %v1041
  %v1116 = vadd.f32 %v970, %v1110
  %v1117 = vadd.f32 %v971, %v1112
  %v1118 = vxor.u32 %v1114, 2147483648
  %v1119 = vxor.u32 %v1115, 2147483648
  %v1120 = vmul.f32 %v1118, 1.442695
  %v1121 = vpow.pop %v1120
  %v1122 = vmul.f32 %v1119, 1.442695
  %v1123 = vpow.pop %v1122
  %v1124 = vadd.f32 %v1121, 1.0
  %v1125 = vadd.f32 %v1123, 1.0
  %v1126 = vrcp.pop %v1124
  %v1127 = vmul.f32 1.0, %v1126
  %v1128 = vrcp.pop %v1125
  %v1129 = vmul.f32 1.0, %v1128
  %v1130 = vmul.f32 %v1127, %v1116
  %v1131 = vadd.f32 %v1117, %v1130
  %v1132 = vtanh.pop %v1131
  %v1133 = vsub.f32 1.0, %v1129
  %v1134 = vmul.f32 %v1133, %v1132
  %v1135 = vmul.f32 %v1129, %v964
  %v1136 = vadd.f32 %v1134, %v1135
  %s1137 = smul.u32 5, 4
  %s1138 = smul.addr %s1137, 8
  %s1139 = scalar_lea.vmem [#allocation3], %s1138
  %v1140 = vld [vmem:[%s1139] sm:$0xff]
  %v1141 = vld [vmem:[%s1139 + $0x8] sm:$0xff]
  %v1142 = vld [vmem:[%s1139 + $0x10] sm:$0xff]
  %v1143 = vld [vmem:[%s1139 + $0x18] sm:$0xff]
  %1144 = vmatprep.subr.mxu0 %v453
  %1145 = vmatpush1.msra.mxu0 %v452
  %1146 = vmatprep.subr.mxu0 %v449
  %1147 = vmatpush1.msra.mxu0 %v448
  %1148 = vmatprep.subr.mxu0 %v445
  %1149 = vmatpush1.msra.mxu0 %v444
  %1150 = vmatprep.subr.mxu0 %v441
  %1151 = vmatpush1.msra.mxu0 %v440
  %1152 = vmatprep.subr.mxu0 %v437
  %1153 = vmatpush1.msra.mxu0 %v436
  %1154 = vmatprep.subr.mxu0 %v433
  %1155 = vmatpush1.msra.mxu0 %v432
  %1156 = vmatprep.subr.mxu0 %v429
  %1157 = vmatpush1.msra.mxu0 %v428
  %1158 = vmatprep.subr.mxu0 %v425
  %1159 = vmatpush1.msra.mxu0 %v424
  %1160 = vmatprep.subr.mxu0 %v421
  %1161 = vmatpush1.msra.mxu0 %v420
  %1162 = vmatprep.subr.mxu0 %v417
  %1163 = vmatpush1.msra.mxu0 %v416
  %1164 = vmatprep.subr.mxu0 %v413
  %1165 = vmatpush1.msra.mxu0 %v412
  %1166 = vmatprep.subr.mxu0 %v409
  %1167 = vmatpush1.msra.mxu0 %v408
  %1168 = vmatprep.subr.mxu0 %v405
  %1169 = vmatpush1.msra.mxu0 %v404
  %1170 = vmatprep.subr.mxu0 %v401
  %1171 = vmatpush1.msra.mxu0 %v400
  %1172 = vmatprep.subr.mxu0 %v397
  %1173 = vmatpush1.msra.mxu0 %v396
  %1174 = vmatprep.subr.mxu0 %v393
  %1175 = vmatpush1.msra.mxu0 %v392
  %1176 = vmatprep.subr.mxu0 0.0
  %1177 = vmatpush2.msra.mxu0 0.0
  %1178 = vmatprep.subr.mxu0 0.0
  %1179 = vmatpush2.msra.mxu0 0.0
  %1180 = vmatprep.subr.mxu0 0.0
  %1181 = vmatpush2.msra.mxu0 0.0
  %1182 = vmatprep.subr.mxu0 0.0
  %1183 = vmatpush2.msra.mxu0 0.0
  %1184 = vmatprep.subr.mxu0 0.0
  %1185 = vmatpush2.msra.mxu0 0.0
  %1186 = vmatprep.subr.mxu0 0.0
  %1187 = vmatpush2.msra.mxu0 0.0
  %1188 = vmatprep.subr.mxu0 0.0
  %1189 = vmatpush2.msra.mxu0 0.0
  %1190 = vmatprep.subr.mxu0 0.0
  %1191 = vmatpush2.msra.mxu0 0.0
  %1192 = vmatprep.subr.mxu0 0.0
  %1193 = vmatpush2.msra.mxu0 0.0
  %1194 = vmatprep.subr.mxu0 0.0
  %1195 = vmatpush2.msra.mxu0 0.0
  %1196 = vmatprep.subr.mxu0 0.0
  %1197 = vmatpush2.msra.mxu0 0.0
  %1198 = vmatprep.subr.mxu0 0.0
  %1199 = vmatpush2.msra.mxu0 0.0
  %1200 = vmatprep.subr.mxu0 0.0
  %1201 = vmatpush2.msra.mxu0 0.0
  %1202 = vmatprep.subr.mxu0 0.0
  %1203 = vmatpush2.msra.mxu0 0.0
  %1204 = vmatprep.subr.mxu0 0.0
  %1205 = vmatpush2.msra.mxu0 0.0
  %1206 = vmatprep.subr.mxu0 0.0
  %1207 = vmatpush2.msra.mxu0 0.0
  %1208 = vmatprep.mubr.f32.mxu0 0.0
  %1209 = vmatmul.mubr.f32.gmra.mxu0 %v1136
  %v1210 = vpop.f32.mrf.mxu0
  %v1211 = vadd.f32 0.0, %v1210
  %v1212 = vpop.f32.mrf.mxu0
  %v1213 = vadd.f32 0.0, %v1212
  %1214 = vdwg.mxu0
  %1215 = vmatprep.subr.mxu0 %v455
  %1216 = vmatpush1.msra.mxu0 %v454
  %1217 = vmatprep.subr.mxu0 %v451
  %1218 = vmatpush1.msra.mxu0 %v450
  %1219 = vmatprep.subr.mxu0 %v447
  %1220 = vmatpush1.msra.mxu0 %v446
  %1221 = vmatprep.subr.mxu0 %v443
  %1222 = vmatpush1.msra.mxu0 %v442
  %1223 = vmatprep.subr.mxu0 %v439
  %1224 = vmatpush1.msra.mxu0 %v438
  %1225 = vmatprep.subr.mxu0 %v435
  %1226 = vmatpush1.msra.mxu0 %v434
  %1227 = vmatprep.subr.mxu0 %v431
  %1228 = vmatpush1.msra.mxu0 %v430
  %1229 = vmatprep.subr.mxu0 %v427
  %1230 = vmatpush1.msra.mxu0 %v426
  %1231 = vmatprep.subr.mxu0 %v423
  %1232 = vmatpush1.msra.mxu0 %v422
  %1233 = vmatprep.subr.mxu0 %v419
  %1234 = vmatpush1.msra.mxu0 %v418
  %1235 = vmatprep.subr.mxu0 %v415
  %1236 = vmatpush1.msra.mxu0 %v414
  %1237 = vmatprep.subr.mxu0 %v411
  %1238 = vmatpush1.msra.mxu0 %v410
  %1239 = vmatprep.subr.mxu0 %v407
  %1240 = vmatpush1.msra.mxu0 %v406
  %1241 = vmatprep.subr.mxu0 %v403
  %1242 = vmatpush1.msra.mxu0 %v402
  %1243 = vmatprep.subr.mxu0 %v399
  %1244 = vmatpush1.msra.mxu0 %v398
  %1245 = vmatprep.subr.mxu0 %v395
  %1246 = vmatpush1.msra.mxu0 %v394
  %1247 = vmatprep.subr.mxu0 0.0
  %1248 = vmatpush2.msra.mxu0 0.0
  %1249 = vmatprep.subr.mxu0 0.0
  %1250 = vmatpush2.msra.mxu0 0.0
  %1251 = vmatprep.subr.mxu0 0.0
  %1252 = vmatpush2.msra.mxu0 0.0
  %1253 = vmatprep.subr.mxu0 0.0
  %1254 = vmatpush2.msra.mxu0 0.0
  %1255 = vmatprep.subr.mxu0 0.0
  %1256 = vmatpush2.msra.mxu0 0.0
  %1257 = vmatprep.subr.mxu0 0.0
  %1258 = vmatpush2.msra.mxu0 0.0
  %1259 = vmatprep.subr.mxu0 0.0
  %1260 = vmatpush2.msra.mxu0 0.0
  %1261 = vmatprep.subr.mxu0 0.0
  %1262 = vmatpush2.msra.mxu0 0.0
  %1263 = vmatprep.subr.mxu0 0.0
  %1264 = vmatpush2.msra.mxu0 0.0
  %1265 = vmatprep.subr.mxu0 0.0
  %1266 = vmatpush2.msra.mxu0 0.0
  %1267 = vmatprep.subr.mxu0 0.0
  %1268 = vmatpush2.msra.mxu0 0.0
  %1269 = vmatprep.subr.mxu0 0.0
  %1270 = vmatpush2.msra.mxu0 0.0
  %1271 = vmatprep.subr.mxu0 0.0
  %1272 = vmatpush2.msra.mxu0 0.0
  %1273 = vmatprep.subr.mxu0 0.0
  %1274 = vmatpush2.msra.mxu0 0.0
  %1275 = vmatprep.subr.mxu0 0.0
  %1276 = vmatpush2.msra.mxu0 0.0
  %1277 = vmatprep.subr.mxu0 0.0
  %1278 = vmatpush2.msra.mxu0 0.0
  %1279 = vmatprep.mubr.f32.mxu0 0.0
  %1280 = vmatmul.mubr.f32.gmra.mxu0 %v1136
  %v1281 = vpop.f32.mrf.mxu0
  %v1282 = vadd.f32 0.0, %v1281
  %v1283 = vpop.f32.mrf.mxu0
  %v1284 = vadd.f32 0.0, %v1283
  %1285 = vdwg.mxu0
  %v1286 = vadd.f32 %v1140, %v1211
  %v1287 = vadd.f32 %v1141, %v1213
  %v1288 = vadd.f32 %v1142, %v1282
  %v1289 = vadd.f32 %v1143, %v1284
  %v1290 = vxor.u32 %v1286, 2147483648
  %v1291 = vxor.u32 %v1287, 2147483648
  %v1292 = vmul.f32 %v1290, 1.442695
  %v1293 = vpow.pop %v1292
  %v1294 = vmul.f32 %v1291, 1.442695
  %v1295 = vpow.pop %v1294
  %v1296 = vadd.f32 %v1293, 1.0
  %v1297 = vadd.f32 %v1295, 1.0
  %v1298 = vrcp.pop %v1296
  %v1299 = vmul.f32 1.0, %v1298
  %v1300 = vrcp.pop %v1297
  %v1301 = vmul.f32 1.0, %v1300
  %v1302 = vmul.f32 %v1299, %v1288
  %v1303 = vadd.f32 %v1289, %v1302
  %v1304 = vtanh.pop %v1303
  %v1305 = vsub.f32 1.0, %v1301
  %v1306 = vmul.f32 %v1305, %v1304
  %v1307 = vmul.f32 %v1301, %v1136
  %v1308 = vadd.f32 %v1306, %v1307
  %s1309 = smul.u32 6, 4
  %s1310 = smul.addr %s1309, 8
  %s1311 = scalar_lea.vmem [#allocation3], %s1310
  %v1312 = vld [vmem:[%s1311] sm:$0xff]
  %v1313 = vld [vmem:[%s1311 + $0x8] sm:$0xff]
  %v1314 = vld [vmem:[%s1311 + $0x10] sm:$0xff]
  %v1315 = vld [vmem:[%s1311 + $0x18] sm:$0xff]
  %1316 = vmatprep.subr.mxu0 %v453
  %1317 = vmatpush1.msra.mxu0 %v452
  %1318 = vmatprep.subr.mxu0 %v449
  %1319 = vmatpush1.msra.mxu0 %v448
  %1320 = vmatprep.subr.mxu0 %v445
  %1321 = vmatpush1.msra.mxu0 %v444
  %1322 = vmatprep.subr.mxu0 %v441
  %1323 = vmatpush1.msra.mxu0 %v440
  %1324 = vmatprep.subr.mxu0 %v437
  %1325 = vmatpush1.msra.mxu0 %v436
  %1326 = vmatprep.subr.mxu0 %v433
  %1327 = vmatpush1.msra.mxu0 %v432
  %1328 = vmatprep.subr.mxu0 %v429
  %1329 = vmatpush1.msra.mxu0 %v428
  %1330 = vmatprep.subr.mxu0 %v425
  %1331 = vmatpush1.msra.mxu0 %v424
  %1332 = vmatprep.subr.mxu0 %v421
  %1333 = vmatpush1.msra.mxu0 %v420
  %1334 = vmatprep.subr.mxu0 %v417
  %1335 = vmatpush1.msra.mxu0 %v416
  %1336 = vmatprep.subr.mxu0 %v413
  %1337 = vmatpush1.msra.mxu0 %v412
  %1338 = vmatprep.subr.mxu0 %v409
  %1339 = vmatpush1.msra.mxu0 %v408
  %1340 = vmatprep.subr.mxu0 %v405
  %1341 = vmatpush1.msra.mxu0 %v404
  %1342 = vmatprep.subr.mxu0 %v401
  %1343 = vmatpush1.msra.mxu0 %v400
  %1344 = vmatprep.subr.mxu0 %v397
  %1345 = vmatpush1.msra.mxu0 %v396
  %1346 = vmatprep.subr.mxu0 %v393
  %1347 = vmatpush1.msra.mxu0 %v392
  %1348 = vmatprep.subr.mxu0 0.0
  %1349 = vmatpush2.msra.mxu0 0.0
  %1350 = vmatprep.subr.mxu0 0.0
  %1351 = vmatpush2.msra.mxu0 0.0
  %1352 = vmatprep.subr.mxu0 0.0
  %1353 = vmatpush2.msra.mxu0 0.0
  %1354 = vmatprep.subr.mxu0 0.0
  %1355 = vmatpush2.msra.mxu0 0.0
  %1356 = vmatprep.subr.mxu0 0.0
  %1357 = vmatpush2.msra.mxu0 0.0
  %1358 = vmatprep.subr.mxu0 0.0
  %1359 = vmatpush2.msra.mxu0 0.0
  %1360 = vmatprep.subr.mxu0 0.0
  %1361 = vmatpush2.msra.mxu0 0.0
  %1362 = vmatprep.subr.mxu0 0.0
  %1363 = vmatpush2.msra.mxu0 0.0
  %1364 = vmatprep.subr.mxu0 0.0
  %1365 = vmatpush2.msra.mxu0 0.0
  %1366 = vmatprep.subr.mxu0 0.0
  %1367 = vmatpush2.msra.mxu0 0.0
  %1368 = vmatprep.subr.mxu0 0.0
  %1369 = vmatpush2.msra.mxu0 0.0
  %1370 = vmatprep.subr.mxu0 0.0
  %1371 = vmatpush2.msra.mxu0 0.0
  %1372 = vmatprep.subr.mxu0 0.0
  %1373 = vmatpush2.msra.mxu0 0.0
  %1374 = vmatprep.subr.mxu0 0.0
  %1375 = vmatpush2.msra.mxu0 0.0
  %1376 = vmatprep.subr.mxu0 0.0
  %1377 = vmatpush2.msra.mxu0 0.0
  %1378 = vmatprep.subr.mxu0 0.0
  %1379 = vmatpush2.msra.mxu0 0.0
  %1380 = vmatprep.mubr.f32.mxu0 0.0
  %1381 = vmatmul.mubr.f32.gmra.mxu0 %v1308
  %v1382 = vpop.f32.mrf.mxu0
  %v1383 = vadd.f32 0.0, %v1382
  %v1384 = vpop.f32.mrf.mxu0
  %v1385 = vadd.f32 0.0, %v1384
  %1386 = vdwg.mxu0
  %1387 = vmatprep.subr.mxu0 %v455
  %1388 = vmatpush1.msra.mxu0 %v454
  %1389 = vmatprep.subr.mxu0 %v451
  %1390 = vmatpush1.msra.mxu0 %v450
  %1391 = vmatprep.subr.mxu0 %v447
  %1392 = vmatpush1.msra.mxu0 %v446
  %1393 = vmatprep.subr.mxu0 %v443
  %1394 = vmatpush1.msra.mxu0 %v442
  %1395 = vmatprep.subr.mxu0 %v439
  %1396 = vmatpush1.msra.mxu0 %v438
  %1397 = vmatprep.subr.mxu0 %v435
  %1398 = vmatpush1.msra.mxu0 %v434
  %1399 = vmatprep.subr.mxu0 %v431
  %1400 = vmatpush1.msra.mxu0 %v430
  %1401 = vmatprep.subr.mxu0 %v427
  %1402 = vmatpush1.msra.mxu0 %v426
  %1403 = vmatprep.subr.mxu0 %v423
  %1404 = vmatpush1.msra.mxu0 %v422
  %1405 = vmatprep.subr.mxu0 %v419
  %1406 = vmatpush1.msra.mxu0 %v418
  %1407 = vmatprep.subr.mxu0 %v415
  %1408 = vmatpush1.msra.mxu0 %v414
  %1409 = vmatprep.subr.mxu0 %v411
  %1410 = vmatpush1.msra.mxu0 %v410
  %1411 = vmatprep.subr.mxu0 %v407
  %1412 = vmatpush1.msra.mxu0 %v406
  %1413 = vmatprep.subr.mxu0 %v403
  %1414 = vmatpush1.msra.mxu0 %v402
  %1415 = vmatprep.subr.mxu0 %v399
  %1416 = vmatpush1.msra.mxu0 %v398
  %1417 = vmatprep.subr.mxu0 %v395
  %1418 = vmatpush1.msra.mxu0 %v394
  %1419 = vmatprep.subr.mxu0 0.0
  %1420 = vmatpush2.msra.mxu0 0.0
  %1421 = vmatprep.subr.mxu0 0.0
  %1422 = vmatpush2.msra.mxu0 0.0
  %1423 = vmatprep.subr.mxu0 0.0
  %1424 = vmatpush2.msra.mxu0 0.0
  %1425 = vmatprep.subr.mxu0 0.0
  %1426 = vmatpush2.msra.mxu0 0.0
  %1427 = vmatprep.subr.mxu0 0.0
  %1428 = vmatpush2.msra.mxu0 0.0
  %1429 = vmatprep.subr.mxu0 0.0
  %1430 = vmatpush2.msra.mxu0 0.0
  %1431 = vmatprep.subr.mxu0 0.0
  %1432 = vmatpush2.msra.mxu0 0.0
  %1433 = vmatprep.subr.mxu0 0.0
  %1434 = vmatpush2.msra.mxu0 0.0
  %1435 = vmatprep.subr.mxu0 0.0
  %1436 = vmatpush2.msra.mxu0 0.0
  %1437 = vmatprep.subr.mxu0 0.0
  %1438 = vmatpush2.msra.mxu0 0.0
  %1439 = vmatprep.subr.mxu0 0.0
  %1440 = vmatpush2.msra.mxu0 0.0
  %1441 = vmatprep.subr.mxu0 0.0
  %1442 = vmatpush2.msra.mxu0 0.0
  %1443 = vmatprep.subr.mxu0 0.0
  %1444 = vmatpush2.msra.mxu0 0.0
  %1445 = vmatprep.subr.mxu0 0.0
  %1446 = vmatpush2.msra.mxu0 0.0
  %1447 = vmatprep.subr.mxu0 0.0
  %1448 = vmatpush2.msra.mxu0 0.0
  %1449 = vmatprep.subr.mxu0 0.0
  %1450 = vmatpush2.msra.mxu0 0.0
  %1451 = vmatprep.mubr.f32.mxu0 0.0
  %1452 = vmatmul.mubr.f32.gmra.mxu0 %v1308
  %v1453 = vpop.f32.mrf.mxu0
  %v1454 = vadd.f32 0.0, %v1453
  %v1455 = vpop.f32.mrf.mxu0
  %v1456 = vadd.f32 0.0, %v1455
  %1457 = vdwg.mxu0
  %v1458 = vadd.f32 %v1312, %v1383
  %v1459 = vadd.f32 %v1313, %v1385
  %v1460 = vadd.f32 %v1314, %v1454
  %v1461 = vadd.f32 %v1315, %v1456
  %v1462 = vxor.u32 %v1458, 2147483648
  %v1463 = vxor.u32 %v1459, 2147483648
  %v1464 = vmul.f32 %v1462, 1.442695
  %v1465 = vpow.pop %v1464
  %v1466 = vmul.f32 %v1463, 1.442695
  %v1467 = vpow.pop %v1466
  %v1468 = vadd.f32 %v1465, 1.0
  %v1469 = vadd.f32 %v1467, 1.0
  %v1470 = vrcp.pop %v1468
  %v1471 = vmul.f32 1.0, %v1470
  %v1472 = vrcp.pop %v1469
  %v1473 = vmul.f32 1.0, %v1472
  %v1474 = vmul.f32 %v1471, %v1460
  %v1475 = vadd.f32 %v1461, %v1474
  %v1476 = vtanh.pop %v1475
  %v1477 = vsub.f32 1.0, %v1473
  %v1478 = vmul.f32 %v1477, %v1476
  %v1479 = vmul.f32 %v1473, %v1308
  %v1480 = vadd.f32 %v1478, %v1479
  %s1481 = smul.u32 7, 4
  %s1482 = smul.addr %s1481, 8
  %s1483 = scalar_lea.vmem [#allocation3], %s1482
  %v1484 = vld [vmem:[%s1483] sm:$0xff]
  %v1485 = vld [vmem:[%s1483 + $0x8] sm:$0xff]
  %v1486 = vld [vmem:[%s1483 + $0x10] sm:$0xff]
  %v1487 = vld [vmem:[%s1483 + $0x18] sm:$0xff]
  %1488 = vmatprep.subr.mxu0 %v453
  %1489 = vmatpush1.msra.mxu0 %v452
  %1490 = vmatprep.subr.mxu0 %v449
  %1491 = vmatpush1.msra.mxu0 %v448
  %1492 = vmatprep.subr.mxu0 %v445
  %1493 = vmatpush1.msra.mxu0 %v444
  %1494 = vmatprep.subr.mxu0 %v441
  %1495 = vmatpush1.msra.mxu0 %v440
  %1496 = vmatprep.subr.mxu0 %v437
  %1497 = vmatpush1.msra.mxu0 %v436
  %1498 = vmatprep.subr.mxu0 %v433
  %1499 = vmatpush1.msra.mxu0 %v432
  %1500 = vmatprep.subr.mxu0 %v429
  %1501 = vmatpush1.msra.mxu0 %v428
  %1502 = vmatprep.subr.mxu0 %v425
  %1503 = vmatpush1.msra.mxu0 %v424
  %1504 = vmatprep.subr.mxu0 %v421
  %1505 = vmatpush1.msra.mxu0 %v420
  %1506 = vmatprep.subr.mxu0 %v417
  %1507 = vmatpush1.msra.mxu0 %v416
  %1508 = vmatprep.subr.mxu0 %v413
  %1509 = vmatpush1.msra.mxu0 %v412
  %1510 = vmatprep.subr.mxu0 %v409
  %1511 = vmatpush1.msra.mxu0 %v408
  %1512 = vmatprep.subr.mxu0 %v405
  %1513 = vmatpush1.msra.mxu0 %v404
  %1514 = vmatprep.subr.mxu0 %v401
  %1515 = vmatpush1.msra.mxu0 %v400
  %1516 = vmatprep.subr.mxu0 %v397
  %1517 = vmatpush1.msra.mxu0 %v396
  %1518 = vmatprep.subr.mxu0 %v393
  %1519 = vmatpush1.msra.mxu0 %v392
  %1520 = vmatprep.subr.mxu0 0.0
  %1521 = vmatpush2.msra.mxu0 0.0
  %1522 = vmatprep.subr.mxu0 0.0
  %1523 = vmatpush2.msra.mxu0 0.0
  %1524 = vmatprep.subr.mxu0 0.0
  %1525 = vmatpush2.msra.mxu0 0.0
  %1526 = vmatprep.subr.mxu0 0.0
  %1527 = vmatpush2.msra.mxu0 0.0
  %1528 = vmatprep.subr.mxu0 0.0
  %1529 = vmatpush2.msra.mxu0 0.0
  %1530 = vmatprep.subr.mxu0 0.0
  %1531 = vmatpush2.msra.mxu0 0.0
  %1532 = vmatprep.subr.mxu0 0.0
  %1533 = vmatpush2.msra.mxu0 0.0
  %1534 = vmatprep.subr.mxu0 0.0
  %1535 = vmatpush2.msra.mxu0 0.0
  %1536 = vmatprep.subr.mxu0 0.0
  %1537 = vmatpush2.msra.mxu0 0.0
  %1538 = vmatprep.subr.mxu0 0.0
  %1539 = vmatpush2.msra.mxu0 0.0
  %1540 = vmatprep.subr.mxu0 0.0
  %1541 = vmatpush2.msra.mxu0 0.0
  %1542 = vmatprep.subr.mxu0 0.0
  %1543 = vmatpush2.msra.mxu0 0.0
  %1544 = vmatprep.subr.mxu0 0.0
  %1545 = vmatpush2.msra.mxu0 0.0
  %1546 = vmatprep.subr.mxu0 0.0
  %1547 = vmatpush2.msra.mxu0 0.0
  %1548 = vmatprep.subr.mxu0 0.0
  %1549 = vmatpush2.msra.mxu0 0.0
  %1550 = vmatprep.subr.mxu0 0.0
  %1551 = vmatpush2.msra.mxu0 0.0
  %1552 = vmatprep.mubr.f32.mxu0 0.0
  %1553 = vmatmul.mubr.f32.gmra.mxu0 %v1480
  %v1554 = vpop.f32.mrf.mxu0
  %v1555 = vadd.f32 0.0, %v1554
  %v1556 = vpop.f32.mrf.mxu0
  %v1557 = vadd.f32 0.0, %v1556
  %1558 = vdwg.mxu0
  %1559 = vmatprep.subr.mxu0 %v455
  %1560 = vmatpush1.msra.mxu0 %v454
  %1561 = vmatprep.subr.mxu0 %v451
  %1562 = vmatpush1.msra.mxu0 %v450
  %1563 = vmatprep.subr.mxu0 %v447
  %1564 = vmatpush1.msra.mxu0 %v446
  %1565 = vmatprep.subr.mxu0 %v443
  %1566 = vmatpush1.msra.mxu0 %v442
  %1567 = vmatprep.subr.mxu0 %v439
  %1568 = vmatpush1.msra.mxu0 %v438
  %1569 = vmatprep.subr.mxu0 %v435
  %1570 = vmatpush1.msra.mxu0 %v434
  %1571 = vmatprep.subr.mxu0 %v431
  %1572 = vmatpush1.msra.mxu0 %v430
  %1573 = vmatprep.subr.mxu0 %v427
  %1574 = vmatpush1.msra.mxu0 %v426
  %1575 = vmatprep.subr.mxu0 %v423
  %1576 = vmatpush1.msra.mxu0 %v422
  %1577 = vmatprep.subr.mxu0 %v419
  %1578 = vmatpush1.msra.mxu0 %v418
  %1579 = vmatprep.subr.mxu0 %v415
  %1580 = vmatpush1.msra.mxu0 %v414
  %1581 = vmatprep.subr.mxu0 %v411
  %1582 = vmatpush1.msra.mxu0 %v410
  %1583 = vmatprep.subr.mxu0 %v407
  %1584 = vmatpush1.msra.mxu0 %v406
  %1585 = vmatprep.subr.mxu0 %v403
  %1586 = vmatpush1.msra.mxu0 %v402
  %1587 = vmatprep.subr.mxu0 %v399
  %1588 = vmatpush1.msra.mxu0 %v398
  %1589 = vmatprep.subr.mxu0 %v395
  %1590 = vmatpush1.msra.mxu0 %v394
  %1591 = vmatprep.subr.mxu0 0.0
  %1592 = vmatpush2.msra.mxu0 0.0
  %1593 = vmatprep.subr.mxu0 0.0
  %1594 = vmatpush2.msra.mxu0 0.0
  %1595 = vmatprep.subr.mxu0 0.0
  %1596 = vmatpush2.msra.mxu0 0.0
  %1597 = vmatprep.subr.mxu0 0.0
  %1598 = vmatpush2.msra.mxu0 0.0
  %1599 = vmatprep.subr.mxu0 0.0
  %1600 = vmatpush2.msra.mxu0 0.0
  %1601 = vmatprep.subr.mxu0 0.0
  %1602 = vmatpush2.msra.mxu0 0.0
  %1603 = vmatprep.subr.mxu0 0.0
  %1604 = vmatpush2.msra.mxu0 0.0
  %1605 = vmatprep.subr.mxu0 0.0
  %1606 = vmatpush2.msra.mxu0 0.0
  %1607 = vmatprep.subr.mxu0 0.0
  %1608 = vmatpush2.msra.mxu0 0.0
  %1609 = vmatprep.subr.mxu0 0.0
  %1610 = vmatpush2.msra.mxu0 0.0
  %1611 = vmatprep.subr.mxu0 0.0
  %1612 = vmatpush2.msra.mxu0 0.0
  %1613 = vmatprep.subr.mxu0 0.0
  %1614 = vmatpush2.msra.mxu0 0.0
  %1615 = vmatprep.subr.mxu0 0.0
  %1616 = vmatpush2.msra.mxu0 0.0
  %1617 = vmatprep.subr.mxu0 0.0
  %1618 = vmatpush2.msra.mxu0 0.0
  %1619 = vmatprep.subr.mxu0 0.0
  %1620 = vmatpush2.msra.mxu0 0.0
  %1621 = vmatprep.subr.mxu0 0.0
  %1622 = vmatpush2.msra.mxu0 0.0
  %1623 = vmatprep.mubr.f32.mxu0 0.0
  %1624 = vmatmul.mubr.f32.gmra.mxu0 %v1480
  %v1625 = vpop.f32.mrf.mxu0
  %v1626 = vadd.f32 0.0, %v1625
  %v1627 = vpop.f32.mrf.mxu0
  %v1628 = vadd.f32 0.0, %v1627
  %1629 = vdwg.mxu0
  %v1630 = vadd.f32 %v1484, %v1555
  %v1631 = vadd.f32 %v1485, %v1557
  %v1632 = vadd.f32 %v1486, %v1626
  %v1633 = vadd.f32 %v1487, %v1628
  %v1634 = vxor.u32 %v1630, 2147483648
  %v1635 = vxor.u32 %v1631, 2147483648
  %v1636 = vmul.f32 %v1634, 1.442695
  %v1637 = vpow.pop %v1636
  %v1638 = vmul.f32 %v1635, 1.442695
  %v1639 = vpow.pop %v1638
  %v1640 = vadd.f32 %v1637, 1.0
  %v1641 = vadd.f32 %v1639, 1.0
  %v1642 = vrcp.pop %v1640
  %v1643 = vmul.f32 1.0, %v1642
  %v1644 = vrcp.pop %v1641
  %v1645 = vmul.f32 1.0, %v1644
  %v1646 = vmul.f32 %v1643, %v1632
  %v1647 = vadd.f32 %v1633, %v1646
  %v1648 = vtanh.pop %v1647
  %v1649 = vsub.f32 1.0, %v1645
  %v1650 = vmul.f32 %v1649, %v1648
  %v1651 = vmul.f32 %v1645, %v1480
  %v1652 = vadd.f32 %v1650, %v1651
  %1653 = vst [vmem:[#allocation2] sm:$0xff] %v1652
  %v1654 = vld [vmem:[#allocation2] sm:$0xff]
  %v1655 = vld [vmem:[%s3] sm:$0xff]
  %v1656 = vld [vmem:[%s3 + $0x8] sm:$0xff]
  %v1657 = vld [vmem:[%s3 + $0x10] sm:$0xff]
  %v1658 = vld [vmem:[%s3 + $0x18] sm:$0xff]
  %v1659 = vld [vmem:[%s3 + $0x20] sm:$0xff]
  %v1660 = vld [vmem:[%s3 + $0x28] sm:$0xff]
  %v1661 = vld [vmem:[%s3 + $0x30] sm:$0xff]
  %v1662 = vld [vmem:[%s3 + $0x38] sm:$0xff]
  %v1663 = vld [vmem:[%s3 + $0x40] sm:$0xff]
  %v1664 = vld [vmem:[%s3 + $0x48] sm:$0xff]
  %v1665 = vld [vmem:[%s3 + $0x50] sm:$0xff]
  %v1666 = vld [vmem:[%s3 + $0x58] sm:$0xff]
  %v1667 = vld [vmem:[%s3 + $0x60] sm:$0xff]
  %v1668 = vld [vmem:[%s3 + $0x68] sm:$0xff]
  %v1669 = vld [vmem:[%s3 + $0x70] sm:$0xff]
  %v1670 = vld [vmem:[%s3 + $0x78] sm:$0xff]
  %v1671 = vld [vmem:[%s3 + $0x80] sm:$0xff]
  %v1672 = vld [vmem:[%s3 + $0x88] sm:$0xff]
  %v1673 = vld [vmem:[%s3 + $0x90] sm:$0xff]
  %v1674 = vld [vmem:[%s3 + $0x98] sm:$0xff]
  %v1675 = vld [vmem:[%s3 + $0xa0] sm:$0xff]
  %v1676 = vld [vmem:[%s3 + $0xa8] sm:$0xff]
  %v1677 = vld [vmem:[%s3 + $0xb0] sm:$0xff]
  %v1678 = vld [vmem:[%s3 + $0xb8] sm:$0xff]
  %v1679 = vld [vmem:[%s3 + $0xc0] sm:$0xff]
  %v1680 = vld [vmem:[%s3 + $0xc8] sm:$0xff]
  %v1681 = vld [vmem:[%s3 + $0xd0] sm:$0xff]
  %v1682 = vld [vmem:[%s3 + $0xd8] sm:$0xff]
  %v1683 = vld [vmem:[%s3 + $0xe0] sm:$0xff]
  %v1684 = vld [vmem:[%s3 + $0xe8] sm:$0xff]
  %v1685 = vld [vmem:[%s3 + $0xf0] sm:$0xff]
  %v1686 = vld [vmem:[%s3 + $0xf8] sm:$0xff]
  %v1687 = vld [vmem:[%s3 + $0x100] sm:$0xff]
  %v1688 = vld [vmem:[%s3 + $0x108] sm:$0xff]
  %v1689 = vld [vmem:[%s3 + $0x110] sm:$0xff]
  %v1690 = vld [vmem:[%s3 + $0x118] sm:$0xff]
  %v1691 = vld [vmem:[%s3 + $0x120] sm:$0xff]
  %v1692 = vld [vmem:[%s3 + $0x128] sm:$0xff]
  %v1693 = vld [vmem:[%s3 + $0x130] sm:$0xff]
  %v1694 = vld [vmem:[%s3 + $0x138] sm:$0xff]
  %v1695 = vld [vmem:[%s3 + $0x140] sm:$0xff]
  %v1696 = vld [vmem:[%s3 + $0x148] sm:$0xff]
  %v1697 = vld [vmem:[%s3 + $0x150] sm:$0xff]
  %v1698 = vld [vmem:[%s3 + $0x158] sm:$0xff]
  %v1699 = vld [vmem:[%s3 + $0x160] sm:$0xff]
  %v1700 = vld [vmem:[%s3 + $0x168] sm:$0xff]
  %v1701 = vld [vmem:[%s3 + $0x170] sm:$0xff]
  %v1702 = vld [vmem:[%s3 + $0x178] sm:$0xff]
  %v1703 = vld [vmem:[%s3 + $0x180] sm:$0xff]
  %v1704 = vld [vmem:[%s3 + $0x188] sm:$0xff]
  %v1705 = vld [vmem:[%s3 + $0x190] sm:$0xff]
  %v1706 = vld [vmem:[%s3 + $0x198] sm:$0xff]
  %v1707 = vld [vmem:[%s3 + $0x1a0] sm:$0xff]
  %v1708 = vld [vmem:[%s3 + $0x1a8] sm:$0xff]
  %v1709 = vld [vmem:[%s3 + $0x1b0] sm:$0xff]
  %v1710 = vld [vmem:[%s3 + $0x1b8] sm:$0xff]
  %v1711 = vld [vmem:[%s3 + $0x1c0] sm:$0xff]
  %v1712 = vld [vmem:[%s3 + $0x1c8] sm:$0xff]
  %v1713 = vld [vmem:[%s3 + $0x1d0] sm:$0xff]
  %v1714 = vld [vmem:[%s3 + $0x1d8] sm:$0xff]
  %v1715 = vld [vmem:[%s3 + $0x1e0] sm:$0xff]
  %v1716 = vld [vmem:[%s3 + $0x1e8] sm:$0xff]
  %v1717 = vld [vmem:[%s3 + $0x1f0] sm:$0xff]
  %v1718 = vld [vmem:[%s3 + $0x1f8] sm:$0xff]
  %v1719 = vld [vmem:[%s2] sm:$0xf]
  %v1721 = vlaneseq
  %v1722 = vshrl.u32 %v1721, 7
  %v1723 = vsub.s32 0, %v1722
  %v1724 = vrot.slane %v1719, %v1723
  %v1725 = vlaneseq
  %v1726 = vshrl.u32 %v1725, 7
  %v1727 = vsub.s32 1, %v1726
  %v1728 = vrot.slane %v1719, %v1727
  %v1729 = vlaneseq
  %v1730 = vshrl.u32 %v1729, 7
  %v1731 = vsub.s32 2, %v1730
  %v1732 = vrot.slane %v1719, %v1731
  %v1733 = vlaneseq
  %v1734 = vshrl.u32 %v1733, 7
  %v1735 = vsub.s32 3, %v1734
  %v1736 = vrot.slane %v1719, %v1735
  %1741 = vmatprep.subr.mxu0 %v1716
  %1742 = vmatpush1.msra.mxu0 %v1715
  %1743 = vmatprep.subr.mxu0 %v1712
  %1744 = vmatpush1.msra.mxu0 %v1711
  %1745 = vmatprep.subr.mxu0 %v1708
  %1746 = vmatpush1.msra.mxu0 %v1707
  %1747 = vmatprep.subr.mxu0 %v1704
  %1748 = vmatpush1.msra.mxu0 %v1703
  %1749 = vmatprep.subr.mxu0 %v1700
  %1750 = vmatpush1.msra.mxu0 %v1699
  %1751 = vmatprep.subr.mxu0 %v1696
  %1752 = vmatpush1.msra.mxu0 %v1695
  %1753 = vmatprep.subr.mxu0 %v1692
  %1754 = vmatpush1.msra.mxu0 %v1691
  %1755 = vmatprep.subr.mxu0 %v1688
  %1756 = vmatpush1.msra.mxu0 %v1687
  %1757 = vmatprep.subr.mxu0 %v1684
  %1758 = vmatpush1.msra.mxu0 %v1683
  %1759 = vmatprep.subr.mxu0 %v1680
  %1760 = vmatpush1.msra.mxu0 %v1679
  %1761 = vmatprep.subr.mxu0 %v1676
  %1762 = vmatpush1.msra.mxu0 %v1675
  %1763 = vmatprep.subr.mxu0 %v1672
  %1764 = vmatpush1.msra.mxu0 %v1671
  %1765 = vmatprep.subr.mxu0 %v1668
  %1766 = vmatpush1.msra.mxu0 %v1667
  %1767 = vmatprep.subr.mxu0 %v1664
  %1768 = vmatpush1.msra.mxu0 %v1663
  %1769 = vmatprep.subr.mxu0 %v1660
  %1770 = vmatpush1.msra.mxu0 %v1659
  %1771 = vmatprep.subr.mxu0 %v1656
  %1772 = vmatpush1.msra.mxu0 %v1655
  %1773 = vmatprep.subr.mxu0 0.0
  %1774 = vmatpush2.msra.mxu0 0.0
  %1775 = vmatprep.subr.mxu0 0.0
  %1776 = vmatpush2.msra.mxu0 0.0
  %1777 = vmatprep.subr.mxu0 0.0
  %1778 = vmatpush2.msra.mxu0 0.0
  %1779 = vmatprep.subr.mxu0 0.0
  %1780 = vmatpush2.msra.mxu0 0.0
  %1781 = vmatprep.subr.mxu0 0.0
  %1782 = vmatpush2.msra.mxu0 0.0
  %1783 = vmatprep.subr.mxu0 0.0
  %1784 = vmatpush2.msra.mxu0 0.0
  %1785 = vmatprep.subr.mxu0 0.0
  %1786 = vmatpush2.msra.mxu0 0.0
  %1787 = vmatprep.subr.mxu0 0.0
  %1788 = vmatpush2.msra.mxu0 0.0
  %1789 = vmatprep.subr.mxu0 0.0
  %1790 = vmatpush2.msra.mxu0 0.0
  %1791 = vmatprep.subr.mxu0 0.0
  %1792 = vmatpush2.msra.mxu0 0.0
  %1793 = vmatprep.subr.mxu0 0.0
  %1794 = vmatpush2.msra.mxu0 0.0
  %1795 = vmatprep.subr.mxu0 0.0
  %1796 = vmatpush2.msra.mxu0 0.0
  %1797 = vmatprep.subr.mxu0 0.0
  %1798 = vmatpush2.msra.mxu0 0.0
  %1799 = vmatprep.subr.mxu0 0.0
  %1800 = vmatpush2.msra.mxu0 0.0
  %1801 = vmatprep.subr.mxu0 0.0
  %1802 = vmatpush2.msra.mxu0 0.0
  %1803 = vmatprep.subr.mxu0 0.0
  %1804 = vmatpush2.msra.mxu0 0.0
  %1805 = vmatprep.mubr.f32.mxu0 0.0
  %1806 = vmatmul.mubr.f32.gmra.mxu0 %v1654
  %v1807 = vpop.f32.mrf.mxu0
  %v1808 = vadd.f32 %v1724, %v1807
  %v1809 = vpop.f32.mrf.mxu0
  %v1810 = vadd.f32 %v1728, %v1809
  %1811 = vdwg.mxu0
  %1812 = vmatprep.subr.mxu0 %v1718
  %1813 = vmatpush1.msra.mxu0 %v1717
  %1814 = vmatprep.subr.mxu0 %v1714
  %1815 = vmatpush1.msra.mxu0 %v1713
  %1816 = vmatprep.subr.mxu0 %v1710
  %1817 = vmatpush1.msra.mxu0 %v1709
  %1818 = vmatprep.subr.mxu0 %v1706
  %1819 = vmatpush1.msra.mxu0 %v1705
  %1820 = vmatprep.subr.mxu0 %v1702
  %1821 = vmatpush1.msra.mxu0 %v1701
  %1822 = vmatprep.subr.mxu0 %v1698
  %1823 = vmatpush1.msra.mxu0 %v1697
  %1824 = vmatprep.subr.mxu0 %v1694
  %1825 = vmatpush1.msra.mxu0 %v1693
  %1826 = vmatprep.subr.mxu0 %v1690
  %1827 = vmatpush1.msra.mxu0 %v1689
  %1828 = vmatprep.subr.mxu0 %v1686
  %1829 = vmatpush1.msra.mxu0 %v1685
  %1830 = vmatprep.subr.mxu0 %v1682
  %1831 = vmatpush1.msra.mxu0 %v1681
  %1832 = vmatprep.subr.mxu0 %v1678
  %1833 = vmatpush1.msra.mxu0 %v1677
  %1834 = vmatprep.subr.mxu0 %v1674
  %1835 = vmatpush1.msra.mxu0 %v1673
  %1836 = vmatprep.subr.mxu0 %v1670
  %1837 = vmatpush1.msra.mxu0 %v1669
  %1838 = vmatprep.subr.mxu0 %v1666
  %1839 = vmatpush1.msra.mxu0 %v1665
  %1840 = vmatprep.subr.mxu0 %v1662
  %1841 = vmatpush1.msra.mxu0 %v1661
  %1842 = vmatprep.subr.mxu0 %v1658
  %1843 = vmatpush1.msra.mxu0 %v1657
  %1844 = vmatprep.subr.mxu0 0.0
  %1845 = vmatpush2.msra.mxu0 0.0
  %1846 = vmatprep.subr.mxu0 0.0
  %1847 = vmatpush2.msra.mxu0 0.0
  %1848 = vmatprep.subr.mxu0 0.0
  %1849 = vmatpush2.msra.mxu0 0.0
  %1850 = vmatprep.subr.mxu0 0.0
  %1851 = vmatpush2.msra.mxu0 0.0
  %1852 = vmatprep.subr.mxu0 0.0
  %1853 = vmatpush2.msra.mxu0 0.0
  %1854 = vmatprep.subr.mxu0 0.0
  %1855 = vmatpush2.msra.mxu0 0.0
  %1856 = vmatprep.subr.mxu0 0.0
  %1857 = vmatpush2.msra.mxu0 0.0
  %1858 = vmatprep.subr.mxu0 0.0
  %1859 = vmatpush2.msra.mxu0 0.0
  %1860 = vmatprep.subr.mxu0 0.0
  %1861 = vmatpush2.msra.mxu0 0.0
  %1862 = vmatprep.subr.mxu0 0.0
  %1863 = vmatpush2.msra.mxu0 0.0
  %1864 = vmatprep.subr.mxu0 0.0
  %1865 = vmatpush2.msra.mxu0 0.0
  %1866 = vmatprep.subr.mxu0 0.0
  %1867 = vmatpush2.msra.mxu0 0.0
  %1868 = vmatprep.subr.mxu0 0.0
  %1869 = vmatpush2.msra.mxu0 0.0
  %1870 = vmatprep.subr.mxu0 0.0
  %1871 = vmatpush2.msra.mxu0 0.0
  %1872 = vmatprep.subr.mxu0 0.0
  %1873 = vmatpush2.msra.mxu0 0.0
  %1874 = vmatprep.subr.mxu0 0.0
  %1875 = vmatpush2.msra.mxu0 0.0
  %1876 = vmatprep.mubr.f32.mxu0 0.0
  %1877 = vmatmul.mubr.f32.gmra.mxu0 %v1654
  %v1878 = vpop.f32.mrf.mxu0
  %v1879 = vadd.f32 %v1732, %v1878
  %v1880 = vpop.f32.mrf.mxu0
  %v1881 = vadd.f32 %v1736, %v1880
  %1882 = vdwg.mxu0
  %v1883 = vxor.u32 %v1808, 2147483648
  %v1884 = vxor.u32 %v1810, 2147483648
  %v1885 = vmul.f32 %v1883, 1.442695
  %v1886 = vpow.pop %v1885
  %v1887 = vmul.f32 %v1884, 1.442695
  %v1888 = vpow.pop %v1887
  %v1889 = vadd.f32 %v1886, 1.0
  %v1890 = vadd.f32 %v1888, 1.0
  %v1891 = vrcp.pop %v1889
  %v1892 = vmul.f32 1.0, %v1891
  %v1893 = vrcp.pop %v1890
  %v1894 = vmul.f32 1.0, %v1893
  %v1895 = vmul.f32 %v1892, %v1879
  %v1896 = vadd.f32 %v1881, %v1895
  %v1897 = vtanh.pop %v1896
  %v1898 = vsub.f32 1.0, %v1894
  %v1899 = vmul.f32 %v1898, %v1897
  %v1900 = vmul.f32 %v1894, %v1654
  %v1901 = vadd.f32 %v1899, %v1900
  %v1902 = vld [vmem:[%s4] sm:$0x1]
  %v1904 = vlaneseq
  %v1905 = vshrl.u32 %v1904, 7
  %v1906 = vsub.s32 0, %v1905
  %v1907 = vrot.slane %v1902, %v1906
  %1908 = vrot.lane.b32.xlu0 %v1907, 64
  %v1909 = vpop.permute.xlu0 %1908
  %v1911 = vmul.f32 %v1901, %v1909
  %v1912 = vld [vmem:[%s5] sm:$0x1]
  %v1914 = vlaneseq
  %v1915 = vshrl.u32 %v1914, 7
  %v1916 = vsub.s32 0, %v1915
  %v1917 = vrot.slane %v1912, %v1916
  %1918 = vrot.lane.b32.xlu0 %v1917, 64
  %v1919 = vpop.permute.xlu0 %1918
  %v1921 = vadd.f32 %v1911, %v1919
  %vm1922 = vcmp.ge.f32.partialorder %v1921, 0.0
  %v1923 = vmul.f32 %v1921, 0.22916667
  %v1924 = vsel %vm1922, %v1921, %v1923
  %v1925 = vld [vmem:[%s6] sm:$0xff]
  %v1926 = vld [vmem:[%s6 + $0x8] sm:$0xff]
  %v1927 = vld [vmem:[%s6 + $0x10] sm:$0xff]
  %v1928 = vld [vmem:[%s6 + $0x18] sm:$0xff]
  %v1929 = vld [vmem:[%s6 + $0x20] sm:$0xff]
  %v1930 = vld [vmem:[%s6 + $0x28] sm:$0xff]
  %v1931 = vld [vmem:[%s6 + $0x30] sm:$0xff]
  %v1932 = vld [vmem:[%s6 + $0x38] sm:$0xff]
  %v1933 = vld [vmem:[#allocation4] sm:$0x1]
  %v1935 = vlaneseq
  %v1936 = vshrl.u32 %v1935, 7
  %v1937 = vsub.s32 0, %v1936
  %v1938 = vrot.slane %v1933, %v1937
  %1941 = vrot.lane.b32.xlu0 %v1924, 64
  %v1942 = vpop.permute.xlu0 %1941
  %v1943 = vsel %vm383, %v1942, 0
  %1945 = vmatprep.subr.mxu0 0.0
  %1946 = vmatpush1.msra.mxu0 0.0
  %1947 = vmatprep.subr.mxu0 0.0
  %1948 = vmatpush1.msra.mxu0 0.0
  %1949 = vmatprep.subr.mxu0 0.0
  %1950 = vmatpush1.msra.mxu0 0.0
  %1951 = vmatprep.subr.mxu0 0.0
  %1952 = vmatpush1.msra.mxu0 0.0
  %1953 = vmatprep.subr.mxu0 0.0
  %1954 = vmatpush1.msra.mxu0 0.0
  %1955 = vmatprep.subr.mxu0 0.0
  %1956 = vmatpush1.msra.mxu0 0.0
  %1957 = vmatprep.subr.mxu0 0.0
  %1958 = vmatpush1.msra.mxu0 0.0
  %1959 = vmatprep.subr.mxu0 0.0
  %1960 = vmatpush1.msra.mxu0 0.0
  %1961 = vmatprep.subr.mxu0 0.0
  %1962 = vmatpush1.msra.mxu0 %v1932
  %1963 = vmatprep.subr.mxu0 0.0
  %1964 = vmatpush1.msra.mxu0 %v1931
  %1965 = vmatprep.subr.mxu0 0.0
  %1966 = vmatpush1.msra.mxu0 %v1930
  %1967 = vmatprep.subr.mxu0 0.0
  %1968 = vmatpush1.msra.mxu0 %v1929
  %1969 = vmatprep.subr.mxu0 0.0
  %1970 = vmatpush1.msra.mxu0 %v1928
  %1971 = vmatprep.subr.mxu0 0.0
  %1972 = vmatpush1.msra.mxu0 %v1927
  %1973 = vmatprep.subr.mxu0 0.0
  %1974 = vmatpush1.msra.mxu0 %v1926
  %1975 = vmatprep.subr.mxu0 0.0
  %1976 = vmatpush1.msra.mxu0 %v1925
  %1977 = vmatprep.subr.mxu0 0.0
  %1978 = vmatpush2.msra.mxu0 0.0
  %1979 = vmatprep.subr.mxu0 0.0
  %1980 = vmatpush2.msra.mxu0 0.0
  %1981 = vmatprep.subr.mxu0 0.0
  %1982 = vmatpush2.msra.mxu0 0.0
  %1983 = vmatprep.subr.mxu0 0.0
  %1984 = vmatpush2.msra.mxu0 0.0
  %1985 = vmatprep.subr.mxu0 0.0
  %1986 = vmatpush2.msra.mxu0 0.0
  %1987 = vmatprep.subr.mxu0 0.0
  %1988 = vmatpush2.msra.mxu0 0.0
  %1989 = vmatprep.subr.mxu0 0.0
  %1990 = vmatpush2.msra.mxu0 0.0
  %1991 = vmatprep.subr.mxu0 0.0
  %1992 = vmatpush2.msra.mxu0 0.0
  %1993 = vmatprep.subr.mxu0 0.0
  %1994 = vmatpush2.msra.mxu0 0.0
  %1995 = vmatprep.subr.mxu0 0.0
  %1996 = vmatpush2.msra.mxu0 0.0
  %1997 = vmatprep.subr.mxu0 0.0
  %1998 = vmatpush2.msra.mxu0 0.0
  %1999 = vmatprep.subr.mxu0 0.0
  %2000 = vmatpush2.msra.mxu0 0.0
  %2001 = vmatprep.subr.mxu0 0.0
  %2002 = vmatpush2.msra.mxu0 0.0
  %2003 = vmatprep.subr.mxu0 0.0
  %2004 = vmatpush2.msra.mxu0 0.0
  %2005 = vmatprep.subr.mxu0 0.0
  %2006 = vmatpush2.msra.mxu0 0.0
  %2007 = vmatprep.subr.mxu0 0.0
  %2008 = vmatpush2.msra.mxu0 0.0
  %2009 = vmatprep.mubr.f32.mxu0 0.0
  %2010 = vmatmul.mubr.f32.gmra.mxu0 %v1943
  %v2011 = vpop.f32.mrf.mxu0
  %v2012 = vadd.f32 %v1938, %v2011
  %v2013 = vpop.f32.mrf.mxu0
  %2014 = vdwg.mxu0
  %v2015 = vxor.u32 %v2012, 2147483648
  %v2016 = vmul.f32 %v2015, 1.442695
  %v2017 = vpow.pop %v2016
  %v2018 = vadd.f32 %v2017, 1.0
  %v2019 = vrcp.pop %v2018
  %v2020 = vmul.f32 1.0, %v2019
  %vm2021 = vcmask 7168
  %2022 = vst.msk [vmem:[%s8] sm:$0xff] %vm2021, %v2020
  // Predicated region
  $region34: #{sentiment_rnn_forward.1} parent=0 // pred_check
    _
  $region35: #{sentiment_rnn_forward.1} parent=0 // pred_check_branch
    %2024 = sbr.rel (0) target = $region37
  $region36: #{sentiment_rnn_forward.1} parent=0 // pred_region
    _
  $region37: #{sentiment_rnn_forward.1} parent=0 // pred_fallthru
    _
  // Predicated region
  $region38: #{sentiment_rnn_forward.1} parent=0 // pred_check
    _
  $region39: #{sentiment_rnn_forward.1} parent=0 // pred_check_branch
    %2026 = sbr.rel (0) target = $region41
  $region40: #{sentiment_rnn_forward.1} parent=0 // pred_region
    _
  $region41: #{sentiment_rnn_forward.1} parent=0 // pred_fallthru
    _

</llo_original>
